<compile_context>
chip_gen: v7x
topology: tpu7x:2x2x1
jax: 0.10.0
libtpu: 0.0.40
codegen_flags: <defaults>
</compile_context>

<pallas_src>
import functools
import math

import jax
import jax.numpy as jnp
from jax import lax
from jax.experimental import pallas as pl
from jax.experimental.pallas import tpu as pltpu

# --------------------------- static model dims ----------------------------- #
B = 2            # batch
S = 8            # token sequence length
N_NODES = 8      # tree nodes (chain)
VOCAB = 64
H = 32           # codebert hidden
FFN = 64
MAX_POS = 32
X_SIZE = 32      # treelstm input size (original 100, shrunk)
HS = 32          # treelstm hidden
NUM_CLASSES = 2
LANES = 128      # lane width of the parameter slabs

_VMEM = pl.BlockSpec(memory_space=pltpu.MemorySpace.VMEM)
_SMEM = pl.BlockSpec(memory_space=pltpu.MemorySpace.SMEM)


# ------------------------- parameter slab layout ---------------------------- #

def _build_layout(entries):
    """entries: [(name, (rows, cols))] -> ({name: (row_off, (rows, cols))}, total_rows)."""
    layout, row = {}, 0
    for name, shape in entries:
        layout[name] = (row, shape)
        row += ((shape[0] + 7) // 8) * 8     # keep every param 8-sublane aligned
    return layout, row


CB_ENTRIES = [
    ("tok_emb", (VOCAB, H)),
    ("pos_emb", (MAX_POS, H)),
    ("wqkv", (H, 3 * H)),
    ("bqkv", (1, 3 * H)),
    ("wo", (H, H)),
    ("bo", (1, H)),
    ("g1", (1, H)),
    ("be1", (1, H)),
    ("w1", (H, FFN)),
    ("b1", (1, FFN)),
    ("w2", (FFN, H)),
    ("b2", (1, H)),
    ("g2", (1, H)),
    ("be2", (1, H)),
    ("wp", (H, H)),
    ("bp", (1, H)),
    ("wc", (H, NUM_CLASSES)),
    ("bc", (1, NUM_CLASSES)),
]
CB_LAYOUT, CB_ROWS = _build_layout(CB_ENTRIES)

TL_ENTRIES = [
    ("w_gates", (X_SIZE, 4 * HS)),   # i|o|u|f packed along lanes (4*HS = 128)
    ("u_gates", (HS, 4 * HS)),
    ("b_gates", (1, 4 * HS)),
    ("wcls", (HS, NUM_CLASSES)),
    ("bcls", (1, NUM_CLASSES)),
]
TL_LAYOUT, TL_ROWS = _build_layout(TL_ENTRIES)


def _pack_slab(layout, total_rows, tensors):
    slab = jnp.zeros((total_rows, LANES), jnp.float32)
    for name, arr in tensors.items():
        r0, _ = layout[name]
        slab = slab.at[r0:r0 + arr.shape[0], :arr.shape[1]].set(
            arr.astype(jnp.float32))
    return slab


# ------------------------------ fused kernel -------------------------------- #

def _ln(x, g, b, eps=1e-5):
    mu = jnp.mean(x, axis=-1, keepdims=True)
    var = jnp.mean((x - mu) ** 2, axis=-1, keepdims=True)
    return (x - mu) * lax.rsqrt(var + eps) * g + b


def _read(ref, layout, name):
    r0, (r, c) = layout[name]
    return ref[r0:r0 + r, :c]          # static slice: free


def joint_kernel(w_ref, ids_ref, mask_ref, x_ref, cb_ref, tl_ref,
                 out_ref, xproj_ref):
    f32 = jnp.float32
    cb = functools.partial(_read, cb_ref, CB_LAYOUT)
    tl = functools.partial(_read, tl_ref, TL_LAYOUT)

    # ============================ codebert branch ============================ #
    # Embedding lookup as one-hot @ table (no gather, single MXU matmul).
    ids = ids_ref[...]                                           # [B*S, 1] int32
    iota = lax.broadcasted_iota(jnp.int32, (B * S, VOCAB), 1)
    onehot = (iota == ids).astype(f32)                           # [B*S, VOCAB]
    tok = jnp.dot(onehot, cb("tok_emb"), preferred_element_type=f32)  # [B*S, H]
    pose = cb("pos_emb")[:S, :]                                  # [S, H]
    x2 = (tok.reshape(B, S, H) + pose[None, :, :]).reshape(B * S, H)

    # Fused Q/K/V projection: one [B*S,H] x [H,3H] matmul.
    qkv = jnp.dot(x2, cb("wqkv"), preferred_element_type=f32) + cb("bqkv")
    q = qkv[:, 0:H].reshape(B, S, H)
    k = qkv[:, H:2 * H].reshape(B, S, H)
    v = qkv[:, 2 * H:3 * H].reshape(B, S, H)

    mask = mask_ref[...]                                         # [B, S]
    scores = jnp.einsum('bqd,bkd->bqk', q, k,
                        preferred_element_type=f32) * (1.0 / math.sqrt(H))
    scores = scores + (1.0 - mask[:, None, :]) * (-1e9)
    m = jnp.max(scores, axis=-1, keepdims=True)
    e = jnp.exp(scores - m)
    probs = e * pl.reciprocal(jnp.sum(e, axis=-1, keepdims=True), approx=True)
    ctx = jnp.einsum('bqk,bkd->bqd', probs, v,
                     preferred_element_type=f32).reshape(B * S, H)
    attn = jnp.dot(ctx, cb("wo"), preferred_element_type=f32) + cb("bo")

    h1 = _ln(x2 + attn, cb("g1"), cb("be1"))

    ff = jnp.dot(h1, cb("w1"), preferred_element_type=f32) + cb("b1")
    ff = jax.nn.gelu(ff, approximate=True)
    ff = jnp.dot(ff, cb("w2"), preferred_element_type=f32) + cb("b2")
    h2 = _ln(h1 + ff, cb("g2"), cb("be2"))

    cls = h2.reshape(B, S, H)[:, 0, :]                           # <s> token, [B, H]
    pooled = jnp.tanh(jnp.dot(cls, cb("wp"),
                              preferred_element_type=f32) + cb("bp"))
    logits_a = jnp.dot(pooled, cb("wc"),
                       preferred_element_type=f32) + cb("bc")    # [B, 2]

    # ============================ treelstm branch ============================ #
    # Hoisted input projection: all nodes x all 4 gates in one matmul.
    x_all = x_ref[...]                                           # [N, B, X]
    xproj = jnp.einsum('nbx,xg->nbg', x_all, tl("w_gates"),
                       preferred_element_type=f32) + tl("b_gates")[None, :, :]
    xproj_ref[...] = xproj                                       # [N, B, 4H]

    u_gates = tl("u_gates")                                      # [HS, 4H]
    h0 = jnp.zeros((B, HS), f32)
    c0 = jnp.zeros((B, HS), f32)

    def step(t, carry):
        h, c = carry
        gates = xproj_ref[t] + jnp.dot(h, u_gates,
                                       preferred_element_type=f32)  # [B, 4H]
        i = jax.nn.sigmoid(gates[:, 0:HS])
        o = jax.nn.sigmoid(gates[:, HS:2 * HS])
        u = jnp.tanh(gates[:, 2 * HS:3 * HS])
        f = jax.nn.sigmoid(gates[:, 3 * HS:4 * HS])
        c_new = i * u + f * c
        h_new = o * jnp.tanh(c_new)
        return (h_new, c_new)

    h_final, _ = lax.fori_loop(0, N_NODES, step, (h0, c0), unroll=True)
    logits_b = jnp.dot(h_final, tl("wcls"),
                       preferred_element_type=f32) + tl("bcls")  # [B, 2]

    # ================================ combine ================================ #
    w = w_ref[0]
    out_ref[...] = logits_b * w + logits_a * (1.0 - w)


# -------------------------------- wrapper ----------------------------------- #

@jax.jit
def joint_model_forward(x, y, m, cb_slab, tl_slab, mix_weight):
    ids = y.reshape(B * S, 1).astype(jnp.int32)
    x_nbx = jnp.transpose(x, (1, 0, 2)).astype(jnp.float32)      # [N, B, X]
    return pl.pallas_call(
        joint_kernel,
        out_shape=jax.ShapeDtypeStruct((B, NUM_CLASSES), jnp.float32),
        in_specs=[_SMEM, _VMEM, _VMEM, _VMEM, _VMEM, _VMEM],
        out_specs=_VMEM,
        scratch_shapes=[pltpu.VMEM((N_NODES, B, 4 * HS), jnp.float32)],
    )(mix_weight, ids, m.astype(jnp.float32), x_nbx, cb_slab, tl_slab)


# ------------------------- parameter construction --------------------------- #

def make_params(key):
    ks = iter(jax.random.split(key, 48))
    norm = lambda shape, s=0.02: jax.random.normal(next(ks), shape, jnp.float32) * s
    zeros = lambda shape: jnp.zeros(shape, jnp.float32)
    ones = lambda shape: jnp.ones(shape, jnp.float32)

    wq, wk, wv = norm((H, H)), norm((H, H)), norm((H, H))
    cb_tensors = dict(
        tok_emb=norm((VOCAB, H)),
        pos_emb=norm((MAX_POS, H)),
        wqkv=jnp.concatenate([wq, wk, wv], axis=1),
        bqkv=zeros((1, 3 * H)),
        wo=norm((H, H)), bo=zeros((1, H)),
        g1=ones((1, H)), be1=zeros((1, H)),
        w1=norm((H, FFN)), b1=zeros((1, FFN)),
        w2=norm((FFN, H)), b2=zeros((1, H)),
        g2=ones((1, H)), be2=zeros((1, H)),
        wp=norm((H, H)), bp=zeros((1, H)),
        wc=norm((H, NUM_CLASSES)), bc=zeros((1, NUM_CLASSES)),
    )

    wi, wog, wu, wf = [norm((X_SIZE, HS)) for _ in range(4)]
    ui, uog, uu, uf = [norm((HS, HS)) for _ in range(4)]
    tl_tensors = dict(
        w_gates=jnp.concatenate([wi, wog, wu, wf], axis=1),
        u_gates=jnp.concatenate([ui, uog, uu, uf], axis=1),
        b_gates=zeros((1, 4 * HS)),
        wcls=norm((HS, NUM_CLASSES)),
        bcls=zeros((1, NUM_CLASSES)),
    )

    cb_slab = _pack_slab(CB_LAYOUT, CB_ROWS, cb_tensors)
    tl_slab = _pack_slab(TL_LAYOUT, TL_ROWS, tl_tensors)
    mix_weight = jnp.array([0.5], jnp.float32)   # nn.Parameter(torch.tensor(0.5))
    return cb_slab, tl_slab, mix_weight


# ---------------------------------- main ------------------------------------ #

if __name__ == "__main__":
    key = jax.random.PRNGKey(0)
    k_par, k_x, k_y = jax.random.split(key, 3)

    cb_slab, tl_slab, mix_weight = make_params(k_par)

    x = jax.random.normal(k_x, (B, N_NODES, X_SIZE), jnp.float32)  # tree node feats
    y = jax.random.randint(k_y, (B, S), 0, VOCAB, jnp.int32)       # token ids
    m = jnp.ones((B, S), jnp.float32).at[1, S - 2:].set(0.0)       # attention mask

    out = joint_model_forward(x, y, m, cb_slab, tl_slab, mix_weight)
    out = jax.block_until_ready(out)
    assert out.shape == (B, NUM_CLASSES) and out.dtype == jnp.float32
    print("KERNEL_OK")
</pallas_src>

<mosaic_0001>
module attributes {stable_mosaic.version = 11 : i64} {
  func.func @joint_kernel(%arg0: memref<1xf32, #tpu.memory_space<smem>>, %arg1: memref<16x1xi32, #tpu.memory_space<vmem>>, %arg2: memref<2x8xf32, #tpu.memory_space<vmem>>, %arg3: memref<8x2x32xf32, #tpu.memory_space<vmem>>, %arg4: memref<400x128xf32, #tpu.memory_space<vmem>>, %arg5: memref<112x128xf32, #tpu.memory_space<vmem>>, %arg6: memref<2x2xf32, #tpu.memory_space<vmem>>, %arg7: memref<8x2x128xf32, #tpu.memory_space<vmem>>) attributes {dimension_semantics = [], scalar_prefetch = 0 : i64, scratch_operands = 1 : i64, tpu.core_type = #tpu.core_type<tc>} {
    %c0 = arith.constant 0 : index
    %c0_0 = arith.constant 0 : index
    %0 = vector.load %arg1[%c0, %c0_0] : memref<16x1xi32, #tpu.memory_space<vmem>>, vector<16x1xi32>
    %1 = tpu.iota {dimensions = array<i32: 1>} : vector<16x64xi32>
    %2 = vector.broadcast %0 : vector<16x1xi32> to vector<16x64xi32>
    %3 = arith.cmpi eq, %1, %2 : vector<16x64xi32>
    %4 = arith.extui %3 : vector<16x64xi1> to vector<16x64xi32>
    %5 = arith.sitofp %4 : vector<16x64xi32> to vector<16x64xf32>
    %c0_1 = arith.constant 0 : index
    %c0_2 = arith.constant 0 : index
    %6 = vector.load %arg4[%c0_1, %c0_2] : memref<400x128xf32, #tpu.memory_space<vmem>>, vector<64x32xf32>
    %cst = arith.constant dense<0.000000e+00> : vector<16x32xf32>
    %7 = tpu.matmul %5, %6, %cst {dimension_numbers = #tpu.dot_dimension_numbers<[1], [0], [0], [1], [0, 0, 1, 1], [], []>} : vector<16x64xf32>, vector<64x32xf32>, vector<16x32xf32> -> vector<16x32xf32>
    %c64 = arith.constant 64 : index
    %c0_3 = arith.constant 0 : index
    %8 = vector.load %arg4[%c64, %c0_3] : memref<400x128xf32, #tpu.memory_space<vmem>>, vector<32x32xf32>
    %9 = vector.extract_strided_slice %8 {offsets = [0, 0], sizes = [8, 32], strides = [1, 1]} : vector<32x32xf32> to vector<8x32xf32>
    %10 = vector.shape_cast %7 : vector<16x32xf32> to vector<2x8x32xf32>
    %11 = vector.shape_cast %9 : vector<8x32xf32> to vector<1x8x32xf32>
    %12 = vector.broadcast %11 : vector<1x8x32xf32> to vector<2x8x32xf32>
    %13 = arith.addf %10, %12 : vector<2x8x32xf32>
    %14 = vector.shape_cast %13 : vector<2x8x32xf32> to vector<16x32xf32>
    %c96 = arith.constant 96 : index
    %c0_4 = arith.constant 0 : index
    %15 = vector.load %arg4[%c96, %c0_4] : memref<400x128xf32, #tpu.memory_space<vmem>>, vector<32x96xf32>
    %cst_5 = arith.constant dense<0.000000e+00> : vector<16x96xf32>
    %16 = tpu.matmul %14, %15, %cst_5 {dimension_numbers = #tpu.dot_dimension_numbers<[1], [0], [0], [1], [0, 0, 1, 1], [], []>} : vector<16x32xf32>, vector<32x96xf32>, vector<16x96xf32> -> vector<16x96xf32>
    %c128 = arith.constant 128 : index
    %c0_6 = arith.constant 0 : index
    %17 = vector.load %arg4[%c128, %c0_6] : memref<400x128xf32, #tpu.memory_space<vmem>>, vector<1x96xf32>
    %18 = vector.broadcast %17 : vector<1x96xf32> to vector<16x96xf32>
    %19 = arith.addf %16, %18 : vector<16x96xf32>
    %20 = vector.extract_strided_slice %19 {offsets = [0, 0], sizes = [16, 32], strides = [1, 1]} : vector<16x96xf32> to vector<16x32xf32>
    %21 = vector.shape_cast %20 : vector<16x32xf32> to vector<2x8x32xf32>
    %22 = vector.extract_strided_slice %19 {offsets = [0, 32], sizes = [16, 32], strides = [1, 1]} : vector<16x96xf32> to vector<16x32xf32>
    %23 = vector.shape_cast %22 : vector<16x32xf32> to vector<2x8x32xf32>
    %24 = vector.extract_strided_slice %19 {offsets = [0, 64], sizes = [16, 32], strides = [1, 1]} : vector<16x96xf32> to vector<16x32xf32>
    %25 = vector.shape_cast %24 : vector<16x32xf32> to vector<2x8x32xf32>
    %c0_7 = arith.constant 0 : index
    %c0_8 = arith.constant 0 : index
    %26 = vector.load %arg2[%c0_7, %c0_8] : memref<2x8xf32, #tpu.memory_space<vmem>>, vector<2x8xf32>
    "tpu.trace_start"() <{level = 10 : i32, message = "bqd,bkd->bqk"}> : () -> ()
    %cst_9 = arith.constant dense<0.000000e+00> : vector<2x8x8xf32>
    %27 = tpu.matmul %21, %23, %cst_9 {dimension_numbers = #tpu.dot_dimension_numbers<[2], [2], [1], [1], [0, 0, 0, 1, 1, 1], [0], [0]>} : vector<2x8x32xf32>, vector<2x8x32xf32>, vector<2x8x8xf32> -> vector<2x8x8xf32>
    "tpu.trace_stop"() : () -> ()
    %cst_10 = arith.constant 0.176776692 : f32
    %28 = vector.broadcast %cst_10 : f32 to vector<2x8x8xf32>
    %29 = arith.mulf %27, %28 : vector<2x8x8xf32>
    %30 = vector.shape_cast %26 : vector<2x8xf32> to vector<2x1x8xf32>
    %cst_11 = arith.constant 1.000000e+00 : f32
    %31 = vector.broadcast %cst_11 : f32 to vector<2x1x8xf32>
    %32 = arith.subf %31, %30 : vector<2x1x8xf32>
    %cst_12 = arith.constant -1.000000e+09 : f32
    %33 = vector.broadcast %cst_12 : f32 to vector<2x1x8xf32>
    %34 = arith.mulf %32, %33 : vector<2x1x8xf32>
    %35 = vector.broadcast %34 : vector<2x1x8xf32> to vector<2x8x8xf32>
    %36 = arith.addf %29, %35 : vector<2x8x8xf32>
    %cst_13 = arith.constant dense<0xFF800000> : vector<2x8xf32>
    %37 = vector.multi_reduction <maximumf>, %36, %cst_13 [2] : vector<2x8x8xf32> to vector<2x8xf32>
    %38 = vector.shape_cast %37 : vector<2x8xf32> to vector<2x8x1xf32>
    %39 = vector.broadcast %38 : vector<2x8x1xf32> to vector<2x8x8xf32>
    %40 = arith.subf %36, %39 : vector<2x8x8xf32>
    %41 = math.exp %40 : vector<2x8x8xf32>
    %cst_14 = arith.constant dense<0.000000e+00> : vector<2x8xf32>
    %42 = vector.multi_reduction <add>, %41, %cst_14 [2] : vector<2x8x8xf32> to vector<2x8xf32>
    %43 = vector.shape_cast %42 : vector<2x8xf32> to vector<2x8x1xf32>
    %44 = tpu.reciprocal %43 {approx = true} : vector<2x8x1xf32> -> vector<2x8x1xf32>
    %45 = vector.broadcast %44 : vector<2x8x1xf32> to vector<2x8x8xf32>
    %46 = arith.mulf %41, %45 : vector<2x8x8xf32>
    "tpu.trace_start"() <{level = 10 : i32, message = "bqk,bkd->bqd"}> : () -> ()
    %cst_15 = arith.constant dense<0.000000e+00> : vector<2x8x32xf32>
    %47 = tpu.matmul %46, %25, %cst_15 {dimension_numbers = #tpu.dot_dimension_numbers<[2], [1], [1], [2], [0, 0, 0, 1, 1, 2], [0], [0]>} : vector<2x8x8xf32>, vector<2x8x32xf32>, vector<2x8x32xf32> -> vector<2x8x32xf32>
    "tpu.trace_stop"() : () -> ()
    %48 = vector.shape_cast %47 : vector<2x8x32xf32> to vector<16x32xf32>
    %c136 = arith.constant 136 : index
    %c0_16 = arith.constant 0 : index
    %49 = vector.load %arg4[%c136, %c0_16] : memref<400x128xf32, #tpu.memory_space<vmem>>, vector<32x32xf32>
    %cst_17 = arith.constant dense<0.000000e+00> : vector<16x32xf32>
    %50 = tpu.matmul %48, %49, %cst_17 {dimension_numbers = #tpu.dot_dimension_numbers<[1], [0], [0], [1], [0, 0, 1, 1], [], []>} : vector<16x32xf32>, vector<32x32xf32>, vector<16x32xf32> -> vector<16x32xf32>
    %c168 = arith.constant 168 : index
    %c0_18 = arith.constant 0 : index
    %51 = vector.load %arg4[%c168, %c0_18] : memref<400x128xf32, #tpu.memory_space<vmem>>, vector<1x32xf32>
    %52 = vector.broadcast %51 : vector<1x32xf32> to vector<16x32xf32>
    %53 = arith.addf %50, %52 : vector<16x32xf32>
    %54 = arith.addf %14, %53 : vector<16x32xf32>
    %c176 = arith.constant 176 : index
    %c0_19 = arith.constant 0 : index
    %55 = vector.load %arg4[%c176, %c0_19] : memref<400x128xf32, #tpu.memory_space<vmem>>, vector<1x32xf32>
    %c184 = arith.constant 184 : index
    %c0_20 = arith.constant 0 : index
    %56 = vector.load %arg4[%c184, %c0_20] : memref<400x128xf32, #tpu.memory_space<vmem>>, vector<1x32xf32>
    %cst_21 = arith.constant dense<0.000000e+00> : vector<16xf32>
    %57 = vector.multi_reduction <add>, %54, %cst_21 [1] : vector<16x32xf32> to vector<16xf32>
    %58 = vector.shape_cast %57 : vector<16xf32> to vector<16x1xf32>
    %cst_22 = arith.constant 3.200000e+01 : f32
    %59 = vector.broadcast %cst_22 : f32 to vector<16x1xf32>
    %60 = arith.divf %58, %59 : vector<16x1xf32>
    %61 = vector.broadcast %60 : vector<16x1xf32> to vector<16x32xf32>
    %62 = arith.subf %54, %61 : vector<16x32xf32>
    %63 = arith.mulf %62, %62 : vector<16x32xf32>
    %cst_23 = arith.constant dense<0.000000e+00> : vector<16xf32>
    %64 = vector.multi_reduction <add>, %63, %cst_23 [1] : vector<16x32xf32> to vector<16xf32>
    %65 = vector.shape_cast %64 : vector<16xf32> to vector<16x1xf32>
    %cst_24 = arith.constant 3.200000e+01 : f32
    %66 = vector.broadcast %cst_24 : f32 to vector<16x1xf32>
    %67 = arith.divf %65, %66 : vector<16x1xf32>
    %68 = vector.broadcast %60 : vector<16x1xf32> to vector<16x32xf32>
    %69 = arith.subf %54, %68 : vector<16x32xf32>
    %cst_25 = arith.constant 9.99999974E-6 : f32
    %70 = vector.broadcast %cst_25 : f32 to vector<16x1xf32>
    %71 = arith.addf %67, %70 : vector<16x1xf32>
    %72 = math.rsqrt %71 : vector<16x1xf32>
    %73 = vector.broadcast %72 : vector<16x1xf32> to vector<16x32xf32>
    %74 = arith.mulf %69, %73 : vector<16x32xf32>
    %75 = vector.broadcast %55 : vector<1x32xf32> to vector<16x32xf32>
    %76 = arith.mulf %74, %75 : vector<16x32xf32>
    %77 = vector.broadcast %56 : vector<1x32xf32> to vector<16x32xf32>
    %78 = arith.addf %76, %77 : vector<16x32xf32>
    %c192 = arith.constant 192 : index
    %c0_26 = arith.constant 0 : index
    %79 = vector.load %arg4[%c192, %c0_26] : memref<400x128xf32, #tpu.memory_space<vmem>>, vector<32x64xf32>
    %cst_27 = arith.constant dense<0.000000e+00> : vector<16x64xf32>
    %80 = tpu.matmul %78, %79, %cst_27 {dimension_numbers = #tpu.dot_dimension_numbers<[1], [0], [0], [1], [0, 0, 1, 1], [], []>} : vector<16x32xf32>, vector<32x64xf32>, vector<16x64xf32> -> vector<16x64xf32>
    %c224 = arith.constant 224 : index
    %c0_28 = arith.constant 0 : index
    %81 = vector.load %arg4[%c224, %c0_28] : memref<400x128xf32, #tpu.memory_space<vmem>>, vector<1x64xf32>
    %82 = vector.broadcast %81 : vector<1x64xf32> to vector<16x64xf32>
    %83 = arith.addf %80, %82 : vector<16x64xf32>
    %84 = arith.mulf %83, %83 : vector<16x64xf32>
    %85 = arith.mulf %83, %84 : vector<16x64xf32>
    %cst_29 = arith.constant 4.471500e-02 : f32
    %86 = vector.broadcast %cst_29 : f32 to vector<16x64xf32>
    %87 = arith.mulf %86, %85 : vector<16x64xf32>
    %88 = arith.addf %83, %87 : vector<16x64xf32>
    %cst_30 = arith.constant 0.797884583 : f32
    %89 = vector.broadcast %cst_30 : f32 to vector<16x64xf32>
    %90 = arith.mulf %89, %88 : vector<16x64xf32>
    %91 = math.tanh %90 : vector<16x64xf32>
    %cst_31 = arith.constant 1.000000e+00 : f32
    %92 = vector.broadcast %cst_31 : f32 to vector<16x64xf32>
    %93 = arith.addf %92, %91 : vector<16x64xf32>
    %cst_32 = arith.constant 5.000000e-01 : f32
    %94 = vector.broadcast %cst_32 : f32 to vector<16x64xf32>
    %95 = arith.mulf %94, %93 : vector<16x64xf32>
    %96 = arith.mulf %83, %95 : vector<16x64xf32>
    %c232 = arith.constant 232 : index
    %c0_33 = arith.constant 0 : index
    %97 = vector.load %arg4[%c232, %c0_33] : memref<400x128xf32, #tpu.memory_space<vmem>>, vector<64x32xf32>
    %cst_34 = arith.constant dense<0.000000e+00> : vector<16x32xf32>
    %98 = tpu.matmul %96, %97, %cst_34 {dimension_numbers = #tpu.dot_dimension_numbers<[1], [0], [0], [1], [0, 0, 1, 1], [], []>} : vector<16x64xf32>, vector<64x32xf32>, vector<16x32xf32> -> vector<16x32xf32>
    %c296 = arith.constant 296 : index
    %c0_35 = arith.constant 0 : index
    %99 = vector.load %arg4[%c296, %c0_35] : memref<400x128xf32, #tpu.memory_space<vmem>>, vector<1x32xf32>
    %100 = vector.broadcast %99 : vector<1x32xf32> to vector<16x32xf32>
    %101 = arith.addf %98, %100 : vector<16x32xf32>
    %102 = arith.addf %78, %101 : vector<16x32xf32>
    %c304 = arith.constant 304 : index
    %c0_36 = arith.constant 0 : index
    %103 = vector.load %arg4[%c304, %c0_36] : memref<400x128xf32, #tpu.memory_space<vmem>>, vector<1x32xf32>
    %c312 = arith.constant 312 : index
    %c0_37 = arith.constant 0 : index
    %104 = vector.load %arg4[%c312, %c0_37] : memref<400x128xf32, #tpu.memory_space<vmem>>, vector<1x32xf32>
    %cst_38 = arith.constant dense<0.000000e+00> : vector<16xf32>
    %105 = vector.multi_reduction <add>, %102, %cst_38 [1] : vector<16x32xf32> to vector<16xf32>
    %106 = vector.shape_cast %105 : vector<16xf32> to vector<16x1xf32>
    %cst_39 = arith.constant 3.200000e+01 : f32
    %107 = vector.broadcast %cst_39 : f32 to vector<16x1xf32>
    %108 = arith.divf %106, %107 : vector<16x1xf32>
    %109 = vector.broadcast %108 : vector<16x1xf32> to vector<16x32xf32>
    %110 = arith.subf %102, %109 : vector<16x32xf32>
    %111 = arith.mulf %110, %110 : vector<16x32xf32>
    %cst_40 = arith.constant dense<0.000000e+00> : vector<16xf32>
    %112 = vector.multi_reduction <add>, %111, %cst_40 [1] : vector<16x32xf32> to vector<16xf32>
    %113 = vector.shape_cast %112 : vector<16xf32> to vector<16x1xf32>
    %cst_41 = arith.constant 3.200000e+01 : f32
    %114 = vector.broadcast %cst_41 : f32 to vector<16x1xf32>
    %115 = arith.divf %113, %114 : vector<16x1xf32>
    %116 = vector.broadcast %108 : vector<16x1xf32> to vector<16x32xf32>
    %117 = arith.subf %102, %116 : vector<16x32xf32>
    %cst_42 = arith.constant 9.99999974E-6 : f32
    %118 = vector.broadcast %cst_42 : f32 to vector<16x1xf32>
    %119 = arith.addf %115, %118 : vector<16x1xf32>
    %120 = math.rsqrt %119 : vector<16x1xf32>
    %121 = vector.broadcast %120 : vector<16x1xf32> to vector<16x32xf32>
    %122 = arith.mulf %117, %121 : vector<16x32xf32>
    %123 = vector.broadcast %103 : vector<1x32xf32> to vector<16x32xf32>
    %124 = arith.mulf %122, %123 : vector<16x32xf32>
    %125 = vector.broadcast %104 : vector<1x32xf32> to vector<16x32xf32>
    %126 = arith.addf %124, %125 : vector<16x32xf32>
    %127 = vector.shape_cast %126 : vector<16x32xf32> to vector<2x8x32xf32>
    %128 = vector.extract_strided_slice %127 {offsets = [0, 0, 0], sizes = [2, 1, 32], strides = [1, 1, 1]} : vector<2x8x32xf32> to vector<2x1x32xf32>
    %129 = vector.shape_cast %128 : vector<2x1x32xf32> to vector<2x32xf32>
    %c320 = arith.constant 320 : index
    %c0_43 = arith.constant 0 : index
    %130 = vector.load %arg4[%c320, %c0_43] : memref<400x128xf32, #tpu.memory_space<vmem>>, vector<32x32xf32>
    %cst_44 = arith.constant dense<0.000000e+00> : vector<2x32xf32>
    %131 = tpu.matmul %129, %130, %cst_44 {dimension_numbers = #tpu.dot_dimension_numbers<[1], [0], [0], [1], [0, 0, 1, 1], [], []>} : vector<2x32xf32>, vector<32x32xf32>, vector<2x32xf32> -> vector<2x32xf32>
    %c352 = arith.constant 352 : index
    %c0_45 = arith.constant 0 : index
    %132 = vector.load %arg4[%c352, %c0_45] : memref<400x128xf32, #tpu.memory_space<vmem>>, vector<1x32xf32>
    %133 = vector.broadcast %132 : vector<1x32xf32> to vector<2x32xf32>
    %134 = arith.addf %131, %133 : vector<2x32xf32>
    %135 = math.tanh %134 : vector<2x32xf32>
    %c360 = arith.constant 360 : index
    %c0_46 = arith.constant 0 : index
    %136 = vector.load %arg4[%c360, %c0_46] : memref<400x128xf32, #tpu.memory_space<vmem>>, vector<32x2xf32>
    %cst_47 = arith.constant dense<0.000000e+00> : vector<2x2xf32>
    %137 = tpu.matmul %135, %136, %cst_47 {dimension_numbers = #tpu.dot_dimension_numbers<[1], [0], [0], [1], [0, 0, 1, 1], [], []>} : vector<2x32xf32>, vector<32x2xf32>, vector<2x2xf32> -> vector<2x2xf32>
    %c392 = arith.constant 392 : index
    %c0_48 = arith.constant 0 : index
    %138 = vector.load %arg4[%c392, %c0_48] : memref<400x128xf32, #tpu.memory_space<vmem>>, vector<1x2xf32>
    %139 = vector.broadcast %138 : vector<1x2xf32> to vector<2x2xf32>
    %140 = arith.addf %137, %139 : vector<2x2xf32>
    %c0_49 = arith.constant 0 : index
    %c0_50 = arith.constant 0 : index
    %c0_51 = arith.constant 0 : index
    %141 = vector.load %arg3[%c0_49, %c0_50, %c0_51] : memref<8x2x32xf32, #tpu.memory_space<vmem>>, vector<8x2x32xf32>
    %c0_52 = arith.constant 0 : index
    %c0_53 = arith.constant 0 : index
    %142 = vector.load %arg5[%c0_52, %c0_53] : memref<112x128xf32, #tpu.memory_space<vmem>>, vector<32x128xf32>
    "tpu.trace_start"() <{level = 10 : i32, message = "nbx,xg->nbg"}> : () -> ()
    %cst_54 = arith.constant dense<0.000000e+00> : vector<8x2x128xf32>
    %143 = tpu.matmul %141, %142, %cst_54 {dimension_numbers = #tpu.dot_dimension_numbers<[2], [0], [0, 1], [1], [0, 0, 0, 1, 1, 1], [], []>} : vector<8x2x32xf32>, vector<32x128xf32>, vector<8x2x128xf32> -> vector<8x2x128xf32>
    "tpu.trace_stop"() : () -> ()
    %c64_55 = arith.constant 64 : index
    %c0_56 = arith.constant 0 : index
    %144 = vector.load %arg5[%c64_55, %c0_56] : memref<112x128xf32, #tpu.memory_space<vmem>>, vector<1x128xf32>
    %145 = vector.shape_cast %144 : vector<1x128xf32> to vector<1x1x128xf32>
    %146 = vector.broadcast %145 : vector<1x1x128xf32> to vector<8x2x128xf32>
    %147 = arith.addf %143, %146 : vector<8x2x128xf32>
    %c0_57 = arith.constant 0 : index
    %c0_58 = arith.constant 0 : index
    %c0_59 = arith.constant 0 : index
    %148 = vector.load %arg7[%c0_57, %c0_58, %c0_59] : memref<8x2x128xf32, #tpu.memory_space<vmem>>, vector<8x2x128xf32>
    tpu.vector_store %arg7[%c0_57, %c0_58, %c0_59], %147 {strides = array<i32>} : memref<8x2x128xf32, #tpu.memory_space<vmem>>, vector<8x2x128xf32>,
    %c32 = arith.constant 32 : index
    %c0_60 = arith.constant 0 : index
    %149 = vector.load %arg5[%c32, %c0_60] : memref<112x128xf32, #tpu.memory_space<vmem>>, vector<32x128xf32>
    %cst_61 = arith.constant 0.000000e+00 : f32
    %150 = vector.broadcast %cst_61 : f32 to vector<2x32xf32>
    %cst_62 = arith.constant 0.000000e+00 : f32
    %151 = vector.broadcast %cst_62 : f32 to vector<2x32xf32>
    %c0_i32 = arith.constant 0 : i32
    %152 = arith.index_cast %c0_i32 : i32 to index
    %c0_63 = arith.constant 0 : index
    %c0_64 = arith.constant 0 : index
    %153 = vector.load %arg7[%152, %c0_63, %c0_64] : memref<8x2x128xf32, #tpu.memory_space<vmem>>, vector<1x2x128xf32>
    %154 = vector.shape_cast %153 : vector<1x2x128xf32> to vector<2x128xf32>
    %cst_65 = arith.constant dense<0.000000e+00> : vector<2x128xf32>
    %155 = tpu.matmul %150, %149, %cst_65 {dimension_numbers = #tpu.dot_dimension_numbers<[1], [0], [0], [1], [0, 0, 1, 1], [], []>} : vector<2x32xf32>, vector<32x128xf32>, vector<2x128xf32> -> vector<2x128xf32>
    %156 = arith.addf %154, %155 : vector<2x128xf32>
    %157 = vector.extract_strided_slice %156 {offsets = [0, 0], sizes = [2, 32], strides = [1, 1]} : vector<2x128xf32> to vector<2x32xf32>
    %158 = arith.negf %157 : vector<2x32xf32>
    %159 = math.exp %158 : vector<2x32xf32>
    %cst_66 = arith.constant 1.000000e+00 : f32
    %160 = vector.broadcast %cst_66 : f32 to vector<2x32xf32>
    %161 = arith.addf %160, %159 : vector<2x32xf32>
    %162 = arith.divf %160, %161 : vector<2x32xf32>
    %163 = vector.extract_strided_slice %156 {offsets = [0, 32], sizes = [2, 32], strides = [1, 1]} : vector<2x128xf32> to vector<2x32xf32>
    %164 = arith.negf %163 : vector<2x32xf32>
    %165 = math.exp %164 : vector<2x32xf32>
    %cst_67 = arith.constant 1.000000e+00 : f32
    %166 = vector.broadcast %cst_67 : f32 to vector<2x32xf32>
    %167 = arith.addf %166, %165 : vector<2x32xf32>
    %168 = arith.divf %166, %167 : vector<2x32xf32>
    %169 = vector.extract_strided_slice %156 {offsets = [0, 64], sizes = [2, 32], strides = [1, 1]} : vector<2x128xf32> to vector<2x32xf32>
    %170 = math.tanh %169 : vector<2x32xf32>
    %171 = vector.extract_strided_slice %156 {offsets = [0, 96], sizes = [2, 32], strides = [1, 1]} : vector<2x128xf32> to vector<2x32xf32>
    %172 = arith.negf %171 : vector<2x32xf32>
    %173 = math.exp %172 : vector<2x32xf32>
    %cst_68 = arith.constant 1.000000e+00 : f32
    %174 = vector.broadcast %cst_68 : f32 to vector<2x32xf32>
    %175 = arith.addf %174, %173 : vector<2x32xf32>
    %176 = arith.divf %174, %175 : vector<2x32xf32>
    %177 = arith.mulf %162, %170 : vector<2x32xf32>
    %178 = arith.mulf %176, %151 : vector<2x32xf32>
    %179 = arith.addf %177, %178 : vector<2x32xf32>
    %180 = math.tanh %179 : vector<2x32xf32>
    %181 = arith.mulf %168, %180 : vector<2x32xf32>
    %c1_i32 = arith.constant 1 : i32
    %182 = arith.index_cast %c1_i32 : i32 to index
    %c0_69 = arith.constant 0 : index
    %c0_70 = arith.constant 0 : index
    %183 = vector.load %arg7[%182, %c0_69, %c0_70] : memref<8x2x128xf32, #tpu.memory_space<vmem>>, vector<1x2x128xf32>
    %184 = vector.shape_cast %183 : vector<1x2x128xf32> to vector<2x128xf32>
    %cst_71 = arith.constant dense<0.000000e+00> : vector<2x128xf32>
    %185 = tpu.matmul %181, %149, %cst_71 {dimension_numbers = #tpu.dot_dimension_numbers<[1], [0], [0], [1], [0, 0, 1, 1], [], []>} : vector<2x32xf32>, vector<32x128xf32>, vector<2x128xf32> -> vector<2x128xf32>
    %186 = arith.addf %184, %185 : vector<2x128xf32>
    %187 = vector.extract_strided_slice %186 {offsets = [0, 0], sizes = [2, 32], strides = [1, 1]} : vector<2x128xf32> to vector<2x32xf32>
    %188 = arith.negf %187 : vector<2x32xf32>
    %189 = math.exp %188 : vector<2x32xf32>
    %cst_72 = arith.constant 1.000000e+00 : f32
    %190 = vector.broadcast %cst_72 : f32 to vector<2x32xf32>
    %191 = arith.addf %190, %189 : vector<2x32xf32>
    %192 = arith.divf %190, %191 : vector<2x32xf32>
    %193 = vector.extract_strided_slice %186 {offsets = [0, 32], sizes = [2, 32], strides = [1, 1]} : vector<2x128xf32> to vector<2x32xf32>
    %194 = arith.negf %193 : vector<2x32xf32>
    %195 = math.exp %194 : vector<2x32xf32>
    %cst_73 = arith.constant 1.000000e+00 : f32
    %196 = vector.broadcast %cst_73 : f32 to vector<2x32xf32>
    %197 = arith.addf %196, %195 : vector<2x32xf32>
    %198 = arith.divf %196, %197 : vector<2x32xf32>
    %199 = vector.extract_strided_slice %186 {offsets = [0, 64], sizes = [2, 32], strides = [1, 1]} : vector<2x128xf32> to vector<2x32xf32>
    %200 = math.tanh %199 : vector<2x32xf32>
    %201 = vector.extract_strided_slice %186 {offsets = [0, 96], sizes = [2, 32], strides = [1, 1]} : vector<2x128xf32> to vector<2x32xf32>
    %202 = arith.negf %201 : vector<2x32xf32>
    %203 = math.exp %202 : vector<2x32xf32>
    %cst_74 = arith.constant 1.000000e+00 : f32
    %204 = vector.broadcast %cst_74 : f32 to vector<2x32xf32>
    %205 = arith.addf %204, %203 : vector<2x32xf32>
    %206 = arith.divf %204, %205 : vector<2x32xf32>
    %207 = arith.mulf %192, %200 : vector<2x32xf32>
    %208 = arith.mulf %206, %179 : vector<2x32xf32>
    %209 = arith.addf %207, %208 : vector<2x32xf32>
    %210 = math.tanh %209 : vector<2x32xf32>
    %211 = arith.mulf %198, %210 : vector<2x32xf32>
    %c2_i32 = arith.constant 2 : i32
    %212 = arith.index_cast %c2_i32 : i32 to index
    %c0_75 = arith.constant 0 : index
    %c0_76 = arith.constant 0 : index
    %213 = vector.load %arg7[%212, %c0_75, %c0_76] : memref<8x2x128xf32, #tpu.memory_space<vmem>>, vector<1x2x128xf32>
    %214 = vector.shape_cast %213 : vector<1x2x128xf32> to vector<2x128xf32>
    %cst_77 = arith.constant dense<0.000000e+00> : vector<2x128xf32>
    %215 = tpu.matmul %211, %149, %cst_77 {dimension_numbers = #tpu.dot_dimension_numbers<[1], [0], [0], [1], [0, 0, 1, 1], [], []>} : vector<2x32xf32>, vector<32x128xf32>, vector<2x128xf32> -> vector<2x128xf32>
    %216 = arith.addf %214, %215 : vector<2x128xf32>
    %217 = vector.extract_strided_slice %216 {offsets = [0, 0], sizes = [2, 32], strides = [1, 1]} : vector<2x128xf32> to vector<2x32xf32>
    %218 = arith.negf %217 : vector<2x32xf32>
    %219 = math.exp %218 : vector<2x32xf32>
    %cst_78 = arith.constant 1.000000e+00 : f32
    %220 = vector.broadcast %cst_78 : f32 to vector<2x32xf32>
    %221 = arith.addf %220, %219 : vector<2x32xf32>
    %222 = arith.divf %220, %221 : vector<2x32xf32>
    %223 = vector.extract_strided_slice %216 {offsets = [0, 32], sizes = [2, 32], strides = [1, 1]} : vector<2x128xf32> to vector<2x32xf32>
    %224 = arith.negf %223 : vector<2x32xf32>
    %225 = math.exp %224 : vector<2x32xf32>
    %cst_79 = arith.constant 1.000000e+00 : f32
    %226 = vector.broadcast %cst_79 : f32 to vector<2x32xf32>
    %227 = arith.addf %226, %225 : vector<2x32xf32>
    %228 = arith.divf %226, %227 : vector<2x32xf32>
    %229 = vector.extract_strided_slice %216 {offsets = [0, 64], sizes = [2, 32], strides = [1, 1]} : vector<2x128xf32> to vector<2x32xf32>
    %230 = math.tanh %229 : vector<2x32xf32>
    %231 = vector.extract_strided_slice %216 {offsets = [0, 96], sizes = [2, 32], strides = [1, 1]} : vector<2x128xf32> to vector<2x32xf32>
    %232 = arith.negf %231 : vector<2x32xf32>
    %233 = math.exp %232 : vector<2x32xf32>
    %cst_80 = arith.constant 1.000000e+00 : f32
    %234 = vector.broadcast %cst_80 : f32 to vector<2x32xf32>
    %235 = arith.addf %234, %233 : vector<2x32xf32>
    %236 = arith.divf %234, %235 : vector<2x32xf32>
    %237 = arith.mulf %222, %230 : vector<2x32xf32>
    %238 = arith.mulf %236, %209 : vector<2x32xf32>
    %239 = arith.addf %237, %238 : vector<2x32xf32>
    %240 = math.tanh %239 : vector<2x32xf32>
    %241 = arith.mulf %228, %240 : vector<2x32xf32>
    %c3_i32 = arith.constant 3 : i32
    %242 = arith.index_cast %c3_i32 : i32 to index
    %c0_81 = arith.constant 0 : index
    %c0_82 = arith.constant 0 : index
    %243 = vector.load %arg7[%242, %c0_81, %c0_82] : memref<8x2x128xf32, #tpu.memory_space<vmem>>, vector<1x2x128xf32>
    %244 = vector.shape_cast %243 : vector<1x2x128xf32> to vector<2x128xf32>
    %cst_83 = arith.constant dense<0.000000e+00> : vector<2x128xf32>
    %245 = tpu.matmul %241, %149, %cst_83 {dimension_numbers = #tpu.dot_dimension_numbers<[1], [0], [0], [1], [0, 0, 1, 1], [], []>} : vector<2x32xf32>, vector<32x128xf32>, vector<2x128xf32> -> vector<2x128xf32>
    %246 = arith.addf %244, %245 : vector<2x128xf32>
    %247 = vector.extract_strided_slice %246 {offsets = [0, 0], sizes = [2, 32], strides = [1, 1]} : vector<2x128xf32> to vector<2x32xf32>
    %248 = arith.negf %247 : vector<2x32xf32>
    %249 = math.exp %248 : vector<2x32xf32>
    %cst_84 = arith.constant 1.000000e+00 : f32
    %250 = vector.broadcast %cst_84 : f32 to vector<2x32xf32>
    %251 = arith.addf %250, %249 : vector<2x32xf32>
    %252 = arith.divf %250, %251 : vector<2x32xf32>
    %253 = vector.extract_strided_slice %246 {offsets = [0, 32], sizes = [2, 32], strides = [1, 1]} : vector<2x128xf32> to vector<2x32xf32>
    %254 = arith.negf %253 : vector<2x32xf32>
    %255 = math.exp %254 : vector<2x32xf32>
    %cst_85 = arith.constant 1.000000e+00 : f32
    %256 = vector.broadcast %cst_85 : f32 to vector<2x32xf32>
    %257 = arith.addf %256, %255 : vector<2x32xf32>
    %258 = arith.divf %256, %257 : vector<2x32xf32>
    %259 = vector.extract_strided_slice %246 {offsets = [0, 64], sizes = [2, 32], strides = [1, 1]} : vector<2x128xf32> to vector<2x32xf32>
    %260 = math.tanh %259 : vector<2x32xf32>
    %261 = vector.extract_strided_slice %246 {offsets = [0, 96], sizes = [2, 32], strides = [1, 1]} : vector<2x128xf32> to vector<2x32xf32>
    %262 = arith.negf %261 : vector<2x32xf32>
    %263 = math.exp %262 : vector<2x32xf32>
    %cst_86 = arith.constant 1.000000e+00 : f32
    %264 = vector.broadcast %cst_86 : f32 to vector<2x32xf32>
    %265 = arith.addf %264, %263 : vector<2x32xf32>
    %266 = arith.divf %264, %265 : vector<2x32xf32>
    %267 = arith.mulf %252, %260 : vector<2x32xf32>
    %268 = arith.mulf %266, %239 : vector<2x32xf32>
    %269 = arith.addf %267, %268 : vector<2x32xf32>
    %270 = math.tanh %269 : vector<2x32xf32>
    %271 = arith.mulf %258, %270 : vector<2x32xf32>
    %c4_i32 = arith.constant 4 : i32
    %272 = arith.index_cast %c4_i32 : i32 to index
    %c0_87 = arith.constant 0 : index
    %c0_88 = arith.constant 0 : index
    %273 = vector.load %arg7[%272, %c0_87, %c0_88] : memref<8x2x128xf32, #tpu.memory_space<vmem>>, vector<1x2x128xf32>
    %274 = vector.shape_cast %273 : vector<1x2x128xf32> to vector<2x128xf32>
    %cst_89 = arith.constant dense<0.000000e+00> : vector<2x128xf32>
    %275 = tpu.matmul %271, %149, %cst_89 {dimension_numbers = #tpu.dot_dimension_numbers<[1], [0], [0], [1], [0, 0, 1, 1], [], []>} : vector<2x32xf32>, vector<32x128xf32>, vector<2x128xf32> -> vector<2x128xf32>
    %276 = arith.addf %274, %275 : vector<2x128xf32>
    %277 = vector.extract_strided_slice %276 {offsets = [0, 0], sizes = [2, 32], strides = [1, 1]} : vector<2x128xf32> to vector<2x32xf32>
    %278 = arith.negf %277 : vector<2x32xf32>
    %279 = math.exp %278 : vector<2x32xf32>
    %cst_90 = arith.constant 1.000000e+00 : f32
    %280 = vector.broadcast %cst_90 : f32 to vector<2x32xf32>
    %281 = arith.addf %280, %279 : vector<2x32xf32>
    %282 = arith.divf %280, %281 : vector<2x32xf32>
    %283 = vector.extract_strided_slice %276 {offsets = [0, 32], sizes = [2, 32], strides = [1, 1]} : vector<2x128xf32> to vector<2x32xf32>
    %284 = arith.negf %283 : vector<2x32xf32>
    %285 = math.exp %284 : vector<2x32xf32>
    %cst_91 = arith.constant 1.000000e+00 : f32
    %286 = vector.broadcast %cst_91 : f32 to vector<2x32xf32>
    %287 = arith.addf %286, %285 : vector<2x32xf32>
    %288 = arith.divf %286, %287 : vector<2x32xf32>
    %289 = vector.extract_strided_slice %276 {offsets = [0, 64], sizes = [2, 32], strides = [1, 1]} : vector<2x128xf32> to vector<2x32xf32>
    %290 = math.tanh %289 : vector<2x32xf32>
    %291 = vector.extract_strided_slice %276 {offsets = [0, 96], sizes = [2, 32], strides = [1, 1]} : vector<2x128xf32> to vector<2x32xf32>
    %292 = arith.negf %291 : vector<2x32xf32>
    %293 = math.exp %292 : vector<2x32xf32>
    %cst_92 = arith.constant 1.000000e+00 : f32
    %294 = vector.broadcast %cst_92 : f32 to vector<2x32xf32>
    %295 = arith.addf %294, %293 : vector<2x32xf32>
    %296 = arith.divf %294, %295 : vector<2x32xf32>
    %297 = arith.mulf %282, %290 : vector<2x32xf32>
    %298 = arith.mulf %296, %269 : vector<2x32xf32>
    %299 = arith.addf %297, %298 : vector<2x32xf32>
    %300 = math.tanh %299 : vector<2x32xf32>
    %301 = arith.mulf %288, %300 : vector<2x32xf32>
    %c5_i32 = arith.constant 5 : i32
    %302 = arith.index_cast %c5_i32 : i32 to index
    %c0_93 = arith.constant 0 : index
    %c0_94 = arith.constant 0 : index
    %303 = vector.load %arg7[%302, %c0_93, %c0_94] : memref<8x2x128xf32, #tpu.memory_space<vmem>>, vector<1x2x128xf32>
    %304 = vector.shape_cast %303 : vector<1x2x128xf32> to vector<2x128xf32>
    %cst_95 = arith.constant dense<0.000000e+00> : vector<2x128xf32>
    %305 = tpu.matmul %301, %149, %cst_95 {dimension_numbers = #tpu.dot_dimension_numbers<[1], [0], [0], [1], [0, 0, 1, 1], [], []>} : vector<2x32xf32>, vector<32x128xf32>, vector<2x128xf32> -> vector<2x128xf32>
    %306 = arith.addf %304, %305 : vector<2x128xf32>
    %307 = vector.extract_strided_slice %306 {offsets = [0, 0], sizes = [2, 32], strides = [1, 1]} : vector<2x128xf32> to vector<2x32xf32>
    %308 = arith.negf %307 : vector<2x32xf32>
    %309 = math.exp %308 : vector<2x32xf32>
    %cst_96 = arith.constant 1.000000e+00 : f32
    %310 = vector.broadcast %cst_96 : f32 to vector<2x32xf32>
    %311 = arith.addf %310, %309 : vector<2x32xf32>
    %312 = arith.divf %310, %311 : vector<2x32xf32>
    %313 = vector.extract_strided_slice %306 {offsets = [0, 32], sizes = [2, 32], strides = [1, 1]} : vector<2x128xf32> to vector<2x32xf32>
    %314 = arith.negf %313 : vector<2x32xf32>
    %315 = math.exp %314 : vector<2x32xf32>
    %cst_97 = arith.constant 1.000000e+00 : f32
    %316 = vector.broadcast %cst_97 : f32 to vector<2x32xf32>
    %317 = arith.addf %316, %315 : vector<2x32xf32>
    %318 = arith.divf %316, %317 : vector<2x32xf32>
    %319 = vector.extract_strided_slice %306 {offsets = [0, 64], sizes = [2, 32], strides = [1, 1]} : vector<2x128xf32> to vector<2x32xf32>
    %320 = math.tanh %319 : vector<2x32xf32>
    %321 = vector.extract_strided_slice %306 {offsets = [0, 96], sizes = [2, 32], strides = [1, 1]} : vector<2x128xf32> to vector<2x32xf32>
    %322 = arith.negf %321 : vector<2x32xf32>
    %323 = math.exp %322 : vector<2x32xf32>
    %cst_98 = arith.constant 1.000000e+00 : f32
    %324 = vector.broadcast %cst_98 : f32 to vector<2x32xf32>
    %325 = arith.addf %324, %323 : vector<2x32xf32>
    %326 = arith.divf %324, %325 : vector<2x32xf32>
    %327 = arith.mulf %312, %320 : vector<2x32xf32>
    %328 = arith.mulf %326, %299 : vector<2x32xf32>
    %329 = arith.addf %327, %328 : vector<2x32xf32>
    %330 = math.tanh %329 : vector<2x32xf32>
    %331 = arith.mulf %318, %330 : vector<2x32xf32>
    %c6_i32 = arith.constant 6 : i32
    %332 = arith.index_cast %c6_i32 : i32 to index
    %c0_99 = arith.constant 0 : index
    %c0_100 = arith.constant 0 : index
    %333 = vector.load %arg7[%332, %c0_99, %c0_100] : memref<8x2x128xf32, #tpu.memory_space<vmem>>, vector<1x2x128xf32>
    %334 = vector.shape_cast %333 : vector<1x2x128xf32> to vector<2x128xf32>
    %cst_101 = arith.constant dense<0.000000e+00> : vector<2x128xf32>
    %335 = tpu.matmul %331, %149, %cst_101 {dimension_numbers = #tpu.dot_dimension_numbers<[1], [0], [0], [1], [0, 0, 1, 1], [], []>} : vector<2x32xf32>, vector<32x128xf32>, vector<2x128xf32> -> vector<2x128xf32>
    %336 = arith.addf %334, %335 : vector<2x128xf32>
    %337 = vector.extract_strided_slice %336 {offsets = [0, 0], sizes = [2, 32], strides = [1, 1]} : vector<2x128xf32> to vector<2x32xf32>
    %338 = arith.negf %337 : vector<2x32xf32>
    %339 = math.exp %338 : vector<2x32xf32>
    %cst_102 = arith.constant 1.000000e+00 : f32
    %340 = vector.broadcast %cst_102 : f32 to vector<2x32xf32>
    %341 = arith.addf %340, %339 : vector<2x32xf32>
    %342 = arith.divf %340, %341 : vector<2x32xf32>
    %343 = vector.extract_strided_slice %336 {offsets = [0, 32], sizes = [2, 32], strides = [1, 1]} : vector<2x128xf32> to vector<2x32xf32>
    %344 = arith.negf %343 : vector<2x32xf32>
    %345 = math.exp %344 : vector<2x32xf32>
    %cst_103 = arith.constant 1.000000e+00 : f32
    %346 = vector.broadcast %cst_103 : f32 to vector<2x32xf32>
    %347 = arith.addf %346, %345 : vector<2x32xf32>
    %348 = arith.divf %346, %347 : vector<2x32xf32>
    %349 = vector.extract_strided_slice %336 {offsets = [0, 64], sizes = [2, 32], strides = [1, 1]} : vector<2x128xf32> to vector<2x32xf32>
    %350 = math.tanh %349 : vector<2x32xf32>
    %351 = vector.extract_strided_slice %336 {offsets = [0, 96], sizes = [2, 32], strides = [1, 1]} : vector<2x128xf32> to vector<2x32xf32>
    %352 = arith.negf %351 : vector<2x32xf32>
    %353 = math.exp %352 : vector<2x32xf32>
    %cst_104 = arith.constant 1.000000e+00 : f32
    %354 = vector.broadcast %cst_104 : f32 to vector<2x32xf32>
    %355 = arith.addf %354, %353 : vector<2x32xf32>
    %356 = arith.divf %354, %355 : vector<2x32xf32>
    %357 = arith.mulf %342, %350 : vector<2x32xf32>
    %358 = arith.mulf %356, %329 : vector<2x32xf32>
    %359 = arith.addf %357, %358 : vector<2x32xf32>
    %360 = math.tanh %359 : vector<2x32xf32>
    %361 = arith.mulf %348, %360 : vector<2x32xf32>
    %c7_i32 = arith.constant 7 : i32
    %362 = arith.index_cast %c7_i32 : i32 to index
    %c0_105 = arith.constant 0 : index
    %c0_106 = arith.constant 0 : index
    %363 = vector.load %arg7[%362, %c0_105, %c0_106] : memref<8x2x128xf32, #tpu.memory_space<vmem>>, vector<1x2x128xf32>
    %364 = vector.shape_cast %363 : vector<1x2x128xf32> to vector<2x128xf32>
    %cst_107 = arith.constant dense<0.000000e+00> : vector<2x128xf32>
    %365 = tpu.matmul %361, %149, %cst_107 {dimension_numbers = #tpu.dot_dimension_numbers<[1], [0], [0], [1], [0, 0, 1, 1], [], []>} : vector<2x32xf32>, vector<32x128xf32>, vector<2x128xf32> -> vector<2x128xf32>
    %366 = arith.addf %364, %365 : vector<2x128xf32>
    %367 = vector.extract_strided_slice %366 {offsets = [0, 0], sizes = [2, 32], strides = [1, 1]} : vector<2x128xf32> to vector<2x32xf32>
    %368 = arith.negf %367 : vector<2x32xf32>
    %369 = math.exp %368 : vector<2x32xf32>
    %cst_108 = arith.constant 1.000000e+00 : f32
    %370 = vector.broadcast %cst_108 : f32 to vector<2x32xf32>
    %371 = arith.addf %370, %369 : vector<2x32xf32>
    %372 = arith.divf %370, %371 : vector<2x32xf32>
    %373 = vector.extract_strided_slice %366 {offsets = [0, 32], sizes = [2, 32], strides = [1, 1]} : vector<2x128xf32> to vector<2x32xf32>
    %374 = arith.negf %373 : vector<2x32xf32>
    %375 = math.exp %374 : vector<2x32xf32>
    %cst_109 = arith.constant 1.000000e+00 : f32
    %376 = vector.broadcast %cst_109 : f32 to vector<2x32xf32>
    %377 = arith.addf %376, %375 : vector<2x32xf32>
    %378 = arith.divf %376, %377 : vector<2x32xf32>
    %379 = vector.extract_strided_slice %366 {offsets = [0, 64], sizes = [2, 32], strides = [1, 1]} : vector<2x128xf32> to vector<2x32xf32>
    %380 = math.tanh %379 : vector<2x32xf32>
    %381 = vector.extract_strided_slice %366 {offsets = [0, 96], sizes = [2, 32], strides = [1, 1]} : vector<2x128xf32> to vector<2x32xf32>
    %382 = arith.negf %381 : vector<2x32xf32>
    %383 = math.exp %382 : vector<2x32xf32>
    %cst_110 = arith.constant 1.000000e+00 : f32
    %384 = vector.broadcast %cst_110 : f32 to vector<2x32xf32>
    %385 = arith.addf %384, %383 : vector<2x32xf32>
    %386 = arith.divf %384, %385 : vector<2x32xf32>
    %387 = arith.mulf %372, %380 : vector<2x32xf32>
    %388 = arith.mulf %386, %359 : vector<2x32xf32>
    %389 = arith.addf %387, %388 : vector<2x32xf32>
    %390 = math.tanh %389 : vector<2x32xf32>
    %391 = arith.mulf %378, %390 : vector<2x32xf32>
    %c8_i32 = arith.constant 8 : i32
    %c72 = arith.constant 72 : index
    %c0_111 = arith.constant 0 : index
    %392 = vector.load %arg5[%c72, %c0_111] : memref<112x128xf32, #tpu.memory_space<vmem>>, vector<32x2xf32>
    %cst_112 = arith.constant dense<0.000000e+00> : vector<2x2xf32>
    %393 = tpu.matmul %391, %392, %cst_112 {dimension_numbers = #tpu.dot_dimension_numbers<[1], [0], [0], [1], [0, 0, 1, 1], [], []>} : vector<2x32xf32>, vector<32x2xf32>, vector<2x2xf32> -> vector<2x2xf32>
    %c104 = arith.constant 104 : index
    %c0_113 = arith.constant 0 : index
    %394 = vector.load %arg5[%c104, %c0_113] : memref<112x128xf32, #tpu.memory_space<vmem>>, vector<1x2xf32>
    %395 = vector.broadcast %394 : vector<1x2xf32> to vector<2x2xf32>
    %396 = arith.addf %393, %395 : vector<2x2xf32>
    %c0_114 = arith.constant 0 : index
    %397 = memref.load %arg0[%c0_114] : memref<1xf32, #tpu.memory_space<smem>>
    %398 = vector.broadcast %397 : f32 to vector<2x2xf32>
    %399 = arith.mulf %396, %398 : vector<2x2xf32>
    %cst_115 = arith.constant 1.000000e+00 : f32
    %400 = arith.subf %cst_115, %397 : f32
    %401 = vector.broadcast %400 : f32 to vector<2x2xf32>
    %402 = arith.mulf %140, %401 : vector<2x2xf32>
    %403 = arith.addf %399, %402 : vector<2x2xf32>
    %c0_116 = arith.constant 0 : index
    %c0_117 = arith.constant 0 : index
    %404 = vector.load %arg6[%c0_116, %c0_117] : memref<2x2xf32, #tpu.memory_space<vmem>>, vector<2x2xf32>
    tpu.vector_store %arg6[%c0_116, %c0_117], %403 {strides = array<i32>} : memref<2x2xf32, #tpu.memory_space<vmem>>, vector<2x2xf32>,
    return
  }
}

</mosaic_0001>

<llo_original>
// kernel: joint_model_forward.1
$region0: #{joint_model_forward.1}
  #allocation0 [shape = 'u32[]', space=smem, size = 0x4, offset = 0x4, fixed_abs, tag = 'smem constant byte address 0x4 - core index']
  #allocation1 [shape = 'u32[144,128]{1,0:T(1,128)}', space=vmem, size = 0x12000, scoped, tag = 'internal scratch']
  #allocation2 [shape = 'f32[8,2,128]{2,1,0:T(2,128)}', space=vmem, size = 0x2000, scoped, tag = 'scratch operand']
  #allocation3 [shape = 'f32[1]{0:T(128)S(6)}', space=smem, size = 0x200, scoped, tag = 'scoped memory for joint_model_forward.1']
  %s0 = inlined_call_operand.<no memory space> [shape: f32[1], index: 0, kind: input, shape index: {}]
  %s1 = inlined_call_operand.vmem [shape: s32[16,1], index: 1, kind: input, shape index: {}]
  %s2 = inlined_call_operand.vmem [shape: f32[2,8], index: 2, kind: input, shape index: {}]
  %s3 = inlined_call_operand.vmem [shape: f32[8,2,32], index: 3, kind: input, shape index: {}]
  %s4 = inlined_call_operand.hbm [shape: f32[400,128], index: 4, kind: input, shape index: {}]
  %s5 = inlined_call_operand.hbm [shape: f32[112,128], index: 5, kind: input, shape index: {}]
  %s6 = inlined_call_operand.hbm [shape: f32[2,2], index: 6, kind: output, shape index: {}]
  %s7 = sld [smem:[#allocation0]]
  $region42: #{joint_model_forward.1} parent=0
    _
  %s9 = ssub.s32 1, %s7
  %s10 = scalar_select 0, %s9, %s7
  %11 = sst [smem:[#allocation3]] %s0
  $region1: #{joint_model_forward.1} parent=0
    #allocation4 [shape = 'u8[204800]{0}', space=vmem, size = 0x32000, scoped, tag = 'input window, operand 4, single buffered']
    #allocation5 [shape = 's32[1]{0}', space=sflag, size = 0x4, scoped, tag = 'scoped memory for joint_model_forward.1']
    #allocation6 [shape = 's32[1]{0}', space=sflag, size = 0x4, scoped, tag = 'scoped memory for joint_model_forward.1']
    #allocation7 [shape = 'u8[57344]{0}', space=vmem, size = 0xe000, scoped, tag = 'input window, operand 5, single buffered']
    #allocation8 [shape = 's32[1]{0}', space=sflag, size = 0x4, scoped, tag = 'scoped memory for joint_model_forward.1']
    #allocation9 [shape = 'u8[1024]{0}', space=vmem, size = 0x400, scoped, tag = 'output window, operand 0, single buffered']
    %12 = vsyncpa [#allocation5], 0
    %13 = vsyncpa [#allocation8], 0
    %14 = vsyncpa [#allocation6], 0
    // Predicated region
    $region2: #{joint_model_forward.1} parent=1 // pred_check
      _
    $region3: #{joint_model_forward.1} parent=1 // pred_check_branch
      %16 = sbr.rel (0) target = $region5
    $region4: #{joint_model_forward.1} parent=1 // pred_region
      _
    $region5: #{joint_model_forward.1} parent=1 // pred_fallthru
      _
    // Predicated region
    $region6: #{joint_model_forward.1} parent=1 // pred_check
      _
    $region7: #{joint_model_forward.1} parent=1 // pred_check_branch
      %18 = sbr.rel (0) target = $region9
    $region8: #{joint_model_forward.1} parent=1 // pred_region
      _
    $region9: #{joint_model_forward.1} parent=1 // pred_fallthru
      _
    // Predicated region
    $region10: #{joint_model_forward.1} parent=1 // pred_check
      _
    $region11: #{joint_model_forward.1} parent=1 // pred_check_branch
      %20 = sbr.rel (0) target = $region13
    $region12: #{joint_model_forward.1} parent=1 // pred_region
      _
    $region13: #{joint_model_forward.1} parent=1 // pred_fallthru
      _
    // Predicated region
    $region14: #{joint_model_forward.1} parent=1 // pred_check
      _
    $region15: #{joint_model_forward.1} parent=1 // pred_check_branch
      %22 = sbr.rel (0) target = $region17
    $region16: #{joint_model_forward.1} parent=1 // pred_region
      _
    $region17: #{joint_model_forward.1} parent=1 // pred_fallthru
      _
    // Predicated region
    $region18: #{joint_model_forward.1} parent=1 // pred_check
      _
    $region19: #{joint_model_forward.1} parent=1 // pred_check_branch
      %24 = sbr.rel (0) target = $region21
    $region20: #{joint_model_forward.1} parent=1 // pred_region
      %s26 = ssub.s32 6400, 6400
      %27 = vsyncadd [#allocation5], %s26
      %s28 = sshll.u32 [#allocation4], 4
      %s29 = int_to_ptr.vmem [resolvable:$true] %s28
      %34 = dma.hbm_to_vmem [thread:$0]  %s4, 6400, %s29, [#allocation5], 128, 128, 8
    $region21: #{joint_model_forward.1} parent=1 // pred_fallthru
      _
    // Predicated region
    $region22: #{joint_model_forward.1} parent=1 // pred_check
      _
    $region23: #{joint_model_forward.1} parent=1 // pred_check_branch
      %36 = sbr.rel (0) target = $region25
    $region24: #{joint_model_forward.1} parent=1 // pred_region
      %s38 = ssub.s32 1792, 1792
      %39 = vsyncadd [#allocation8], %s38
      %s40 = sshll.u32 [#allocation7], 4
      %s41 = int_to_ptr.vmem [resolvable:$true] %s40
      %46 = dma.hbm_to_vmem [thread:$0]  %s5, 1792, %s41, [#allocation8], 128, 128, 8
    $region25: #{joint_model_forward.1} parent=1 // pred_fallthru
      _
    // Predicated region
    $region26: #{joint_model_forward.1} parent=1 // pred_check
      _
    $region27: #{joint_model_forward.1} parent=1 // pred_check_branch
      %48 = sbr.rel (0) target = $region29
    $region28: #{joint_model_forward.1} parent=1 // pred_region
      %49 = dma.done [#allocation5], 6400
    $region29: #{joint_model_forward.1} parent=1 // pred_fallthru
      _
    // Predicated region
    $region30: #{joint_model_forward.1} parent=1 // pred_check
      _
    $region31: #{joint_model_forward.1} parent=1 // pred_check_branch
      %51 = sbr.rel (0) target = $region33
    $region32: #{joint_model_forward.1} parent=1 // pred_region
      %52 = dma.done [#allocation8], 1792
    $region33: #{joint_model_forward.1} parent=1 // pred_fallthru
      _
    %v53 = vld [vmem:[%s1] sm:$0xff]
    %v54 = vld [vmem:[%s1 + $0x8] sm:$0xff]
    %v55 = vlaneseq
    %v56 = vand.u32 %v55, 127
    %57 = vset.pattern.permute.xlu0 0
    %58 = vperm.xlu0 %57, %v53
    %v59 = vpop.permute.xlu0 %58
    %60 = vset.pattern.permute.xlu0 0
    %61 = vperm.xlu0 %60, %v54
    %v62 = vpop.permute.xlu0 %61
    %vm63 = vcmp.eq.s32.totalorder %v56, %v59
    %vm64 = vcmp.eq.s32.totalorder %v56, %v62
    %v65 = vsel %vm63, 1, 0
    %v66 = vsel %vm64, 1, 0
    %v67 = vcvt.s32.f32 %v65
    %v68 = vcvt.s32.f32 %v66
    %v69 = vld [vmem:[#allocation4] sm:$0xff]
    %v70 = vld [vmem:[#allocation4 + $0x8] sm:$0xff]
    %v71 = vld [vmem:[#allocation4 + $0x10] sm:$0xff]
    %v72 = vld [vmem:[#allocation4 + $0x18] sm:$0xff]
    %v73 = vld [vmem:[#allocation4 + $0x20] sm:$0xff]
    %v74 = vld [vmem:[#allocation4 + $0x28] sm:$0xff]
    %v75 = vld [vmem:[#allocation4 + $0x30] sm:$0xff]
    %v76 = vld [vmem:[#allocation4 + $0x38] sm:$0xff]
    %vm77 = vcmask 523264
    %v79 = vsel %vm77, %v67, 0
    %v82 = vsel %vm77, %v68, 0
    %84 = vmatprep.subr.mxu0 0.0
    %85 = vmatpush1.msra.mxu0 %v69
    %86 = vmatprep.subr.mxu0 0.0
    %87 = vmatpush1.msra.mxu0 %v70
    %88 = vmatprep.subr.mxu0 0.0
    %89 = vmatpush1.msra.mxu0 %v71
    %90 = vmatprep.subr.mxu0 0.0
    %91 = vmatpush1.msra.mxu0 %v72
    %92 = vmatprep.subr.mxu0 0.0
    %93 = vmatpush1.msra.mxu0 %v73
    %94 = vmatprep.subr.mxu0 0.0
    %95 = vmatpush1.msra.mxu0 %v74
    %96 = vmatprep.subr.mxu0 0.0
    %97 = vmatpush1.msra.mxu0 %v75
    %98 = vmatprep.subr.mxu0 0.0
    %99 = vmatpush1.msra.mxu0 %v76
    %100 = vmatprep.subr.mxu0 0.0
    %101 = vmatpush1.msra.mxu0 0.0
    %102 = vmatprep.subr.mxu0 0.0
    %103 = vmatpush1.msra.mxu0 0.0
    %104 = vmatprep.subr.mxu0 0.0
    %105 = vmatpush1.msra.mxu0 0.0
    %106 = vmatprep.subr.mxu0 0.0
    %107 = vmatpush1.msra.mxu0 0.0
    %108 = vmatprep.subr.mxu0 0.0
    %109 = vmatpush1.msra.mxu0 0.0
    %110 = vmatprep.subr.mxu0 0.0
    %111 = vmatpush1.msra.mxu0 0.0
    %112 = vmatprep.subr.mxu0 0.0
    %113 = vmatpush1.msra.mxu0 0.0
    %114 = vmatprep.subr.mxu0 0.0
    %115 = vmatpush1.msra.mxu0 0.0
    %116 = vmatprep.subr.mxu0 0.0
    %117 = vmatpush1.msra.mxu0 0.0
    %118 = vmatprep.subr.mxu0 0.0
    %119 = vmatpush1.msra.mxu0 0.0
    %120 = vmatprep.subr.mxu0 0.0
    %121 = vmatpush1.msra.mxu0 0.0
    %122 = vmatprep.subr.mxu0 0.0
    %123 = vmatpush1.msra.mxu0 0.0
    %124 = vmatprep.subr.mxu0 0.0
    %125 = vmatpush1.msra.mxu0 0.0
    %126 = vmatprep.subr.mxu0 0.0
    %127 = vmatpush1.msra.mxu0 0.0
    %128 = vmatprep.subr.mxu0 0.0
    %129 = vmatpush1.msra.mxu0 0.0
    %130 = vmatprep.subr.mxu0 0.0
    %131 = vmatpush1.msra.mxu0 0.0
    %132 = vmatprep.subr.mxu0 0.0
    %133 = vmatpush1.msra.mxu0 0.0
    %134 = vmatprep.subr.mxu0 0.0
    %135 = vmatpush1.msra.mxu0 0.0
    %136 = vmatprep.subr.mxu0 0.0
    %137 = vmatpush1.msra.mxu0 0.0
    %138 = vmatprep.subr.mxu0 0.0
    %139 = vmatpush1.msra.mxu0 0.0
    %140 = vmatprep.subr.mxu0 0.0
    %141 = vmatpush1.msra.mxu0 0.0
    %142 = vmatprep.subr.mxu0 0.0
    %143 = vmatpush1.msra.mxu0 0.0
    %144 = vmatprep.subr.mxu0 0.0
    %145 = vmatpush1.msra.mxu0 0.0
    %146 = vmatprep.subr.mxu0 0.0
    %147 = vmatpush1.msra.mxu0 0.0
    %148 = vmatprep.mubr.f32.mxu0 0.0
    %149 = vmatmul.mubr.f32.gmra.mrb[0].mxu0 %v79
    %v150 = vpop.f32.mrb[0].mxu0
    %v151 = vadd.f32 0.0, %v150
    %v152 = vpop.f32.mrb[0].mxu0
    %153 = vmatprep.mubr.f32.mxu0 0.0
    %154 = vmatmul.mubr.f32.gmra.mrb[0].mxu0 %v82
    %v155 = vpop.f32.mrb[0].mxu0
    %v156 = vadd.f32 0.0, %v155
    %v157 = vpop.f32.mrb[0].mxu0
    %158 = vdwg.mxu0
    %v159 = vld [vmem:[#allocation4 + $0x40] sm:$0xff]
    %v160 = vadd.f32 %v151, %v159
    %v161 = vadd.f32 %v156, %v159
    %v162 = vld [vmem:[#allocation4 + $0x60] sm:$0xff]
    %v163 = vld [vmem:[#allocation4 + $0x68] sm:$0xff]
    %v164 = vld [vmem:[#allocation4 + $0x70] sm:$0xff]
    %v165 = vld [vmem:[#allocation4 + $0x78] sm:$0xff]
    %v166 = vld [vmem:[#allocation4 + $0x80] sm:$0x1]
    %v167 = vlaneseq
    %v168 = vshrl.u32 %v167, 7
    %v169 = vsub.s32 0, %v168
    %v170 = vrot.slane %v166, %v169
    %vm171 = vcmask 261120
    %v173 = vsel %vm171, %v160, 0
    %v176 = vsel %vm171, %v161, 0
    %178 = vmatprep.subr.mxu0 0.0
    %179 = vmatpush1.msra.mxu0 %v162
    %180 = vmatprep.subr.mxu0 0.0
    %181 = vmatpush1.msra.mxu0 %v163
    %182 = vmatprep.subr.mxu0 0.0
    %183 = vmatpush1.msra.mxu0 %v164
    %184 = vmatprep.subr.mxu0 0.0
    %185 = vmatpush1.msra.mxu0 %v165
    %186 = vmatprep.subr.mxu0 0.0
    %187 = vmatpush1.msra.mxu0 0.0
    %188 = vmatprep.subr.mxu0 0.0
    %189 = vmatpush1.msra.mxu0 0.0
    %190 = vmatprep.subr.mxu0 0.0
    %191 = vmatpush1.msra.mxu0 0.0
    %192 = vmatprep.subr.mxu0 0.0
    %193 = vmatpush1.msra.mxu0 0.0
    %194 = vmatprep.subr.mxu0 0.0
    %195 = vmatpush1.msra.mxu0 0.0
    %196 = vmatprep.subr.mxu0 0.0
    %197 = vmatpush1.msra.mxu0 0.0
    %198 = vmatprep.subr.mxu0 0.0
    %199 = vmatpush1.msra.mxu0 0.0
    %200 = vmatprep.subr.mxu0 0.0
    %201 = vmatpush1.msra.mxu0 0.0
    %202 = vmatprep.subr.mxu0 0.0
    %203 = vmatpush1.msra.mxu0 0.0
    %204 = vmatprep.subr.mxu0 0.0
    %205 = vmatpush1.msra.mxu0 0.0
    %206 = vmatprep.subr.mxu0 0.0
    %207 = vmatpush1.msra.mxu0 0.0
    %208 = vmatprep.subr.mxu0 0.0
    %209 = vmatpush1.msra.mxu0 0.0
    %210 = vmatprep.subr.mxu0 0.0
    %211 = vmatpush1.msra.mxu0 0.0
    %212 = vmatprep.subr.mxu0 0.0
    %213 = vmatpush1.msra.mxu0 0.0
    %214 = vmatprep.subr.mxu0 0.0
    %215 = vmatpush1.msra.mxu0 0.0
    %216 = vmatprep.subr.mxu0 0.0
    %217 = vmatpush1.msra.mxu0 0.0
    %218 = vmatprep.subr.mxu0 0.0
    %219 = vmatpush1.msra.mxu0 0.0
    %220 = vmatprep.subr.mxu0 0.0
    %221 = vmatpush1.msra.mxu0 0.0
    %222 = vmatprep.subr.mxu0 0.0
    %223 = vmatpush1.msra.mxu0 0.0
    %224 = vmatprep.subr.mxu0 0.0
    %225 = vmatpush1.msra.mxu0 0.0
    %226 = vmatprep.subr.mxu0 0.0
    %227 = vmatpush1.msra.mxu0 0.0
    %228 = vmatprep.subr.mxu0 0.0
    %229 = vmatpush1.msra.mxu0 0.0
    %230 = vmatprep.subr.mxu0 0.0
    %231 = vmatpush1.msra.mxu0 0.0
    %232 = vmatprep.subr.mxu0 0.0
    %233 = vmatpush1.msra.mxu0 0.0
    %234 = vmatprep.subr.mxu0 0.0
    %235 = vmatpush1.msra.mxu0 0.0
    %236 = vmatprep.subr.mxu0 0.0
    %237 = vmatpush1.msra.mxu0 0.0
    %238 = vmatprep.subr.mxu0 0.0
    %239 = vmatpush1.msra.mxu0 0.0
    %240 = vmatprep.subr.mxu0 0.0
    %241 = vmatpush1.msra.mxu0 0.0
    %242 = vmatprep.mubr.f32.mxu0 0.0
    %243 = vmatmul.mubr.f32.gmra.mrb[0].mxu0 %v173
    %v244 = vpop.f32.mrb[0].mxu0
    %v245 = vadd.f32 %v170, %v244
    %v246 = vpop.f32.mrb[0].mxu0
    %247 = vmatprep.mubr.f32.mxu0 0.0
    %248 = vmatmul.mubr.f32.gmra.mrb[0].mxu0 %v176
    %v249 = vpop.f32.mrb[0].mxu0
    %v250 = vadd.f32 %v170, %v249
    %v251 = vpop.f32.mrb[0].mxu0
    %252 = vdwg.mxu0
    %v253 = vld [vmem:[%s2] sm:$0x3]
    %255 = vrot.lane.b32.xlu0 %v245, 96
    %v256 = vpop.permute.xlu0 %255
    %v257 = vsel %vm171, %v245, 0
    %v259 = vsel %vm171, %v256, 0
    %261 = vmatprep.subr.mxu0 0.0
    %262 = vmatpush1.xpose.msra.mxu0 %v259
    %263 = vmatprep.subr.mxu0 0.0
    %264 = vmatpush1.xpose.msra.mxu0 0.0
    %265 = vmatprep.subr.mxu0 0.0
    %266 = vmatpush1.xpose.msra.mxu0 0.0
    %267 = vmatprep.subr.mxu0 0.0
    %268 = vmatpush1.xpose.msra.mxu0 0.0
    %269 = vmatprep.subr.mxu0 0.0
    %270 = vmatpush1.xpose.msra.mxu0 0.0
    %271 = vmatprep.subr.mxu0 0.0
    %272 = vmatpush1.xpose.msra.mxu0 0.0
    %273 = vmatprep.subr.mxu0 0.0
    %274 = vmatpush1.xpose.msra.mxu0 0.0
    %275 = vmatprep.subr.mxu0 0.0
    %276 = vmatpush1.xpose.msra.mxu0 0.0
    %277 = vmatprep.subr.mxu0 0.0
    %278 = vmatpush1.xpose.msra.mxu0 0.0
    %279 = vmatprep.subr.mxu0 0.0
    %280 = vmatpush1.xpose.msra.mxu0 0.0
    %281 = vmatprep.subr.mxu0 0.0
    %282 = vmatpush1.xpose.msra.mxu0 0.0
    %283 = vmatprep.subr.mxu0 0.0
    %284 = vmatpush1.xpose.msra.mxu0 0.0
    %285 = vmatprep.subr.mxu0 0.0
    %286 = vmatpush1.xpose.msra.mxu0 0.0
    %287 = vmatprep.subr.mxu0 0.0
    %288 = vmatpush1.xpose.msra.mxu0 0.0
    %289 = vmatprep.subr.mxu0 0.0
    %290 = vmatpush1.xpose.msra.mxu0 0.0
    %291 = vmatprep.subr.mxu0 0.0
    %292 = vmatpush1.xpose.msra.mxu0 0.0
    %293 = vmatprep.subr.mxu0 0.0
    %294 = vmatpush1.xpose.msra.mxu0 0.0
    %295 = vmatprep.subr.mxu0 0.0
    %296 = vmatpush1.xpose.msra.mxu0 0.0
    %297 = vmatprep.subr.mxu0 0.0
    %298 = vmatpush1.xpose.msra.mxu0 0.0
    %299 = vmatprep.subr.mxu0 0.0
    %300 = vmatpush1.xpose.msra.mxu0 0.0
    %301 = vmatprep.subr.mxu0 0.0
    %302 = vmatpush1.xpose.msra.mxu0 0.0
    %303 = vmatprep.subr.mxu0 0.0
    %304 = vmatpush1.xpose.msra.mxu0 0.0
    %305 = vmatprep.subr.mxu0 0.0
    %306 = vmatpush1.xpose.msra.mxu0 0.0
    %307 = vmatprep.subr.mxu0 0.0
    %308 = vmatpush1.xpose.msra.mxu0 0.0
    %309 = vmatprep.subr.mxu0 0.0
    %310 = vmatpush1.xpose.msra.mxu0 0.0
    %311 = vmatprep.subr.mxu0 0.0
    %312 = vmatpush1.xpose.msra.mxu0 0.0
    %313 = vmatprep.subr.mxu0 0.0
    %314 = vmatpush1.xpose.msra.mxu0 0.0
    %315 = vmatprep.subr.mxu0 0.0
    %316 = vmatpush1.xpose.msra.mxu0 0.0
    %317 = vmatprep.subr.mxu0 0.0
    %318 = vmatpush1.xpose.msra.mxu0 0.0
    %319 = vmatprep.subr.mxu0 0.0
    %320 = vmatpush1.xpose.msra.mxu0 0.0
    %321 = vmatprep.subr.mxu0 0.0
    %322 = vmatpush1.xpose.msra.mxu0 0.0
    %323 = vmatprep.subr.mxu0 0.0
    %324 = vmatpush1.xpose.msra.mxu0 0.0
    %325 = vmatprep.mubr.f32.mxu0 0.0
    %326 = vmatmul.mubr.f32.gmra.mrb[0].mxu0 %v257
    %v327 = vpop.f32.mrb[0].mxu0
    %v328 = vadd.f32 0.0, %v327
    %v329 = vpop.f32.mrb[0].mxu0
    %330 = vdwg.mxu0
    %332 = vrot.lane.b32.xlu0 %v250, 96
    %v333 = vpop.permute.xlu0 %332
    %v334 = vsel %vm171, %v250, 0
    %v336 = vsel %vm171, %v333, 0
    %338 = vmatprep.subr.mxu0 0.0
    %339 = vmatpush1.xpose.msra.mxu0 %v336
    %340 = vmatprep.subr.mxu0 0.0
    %341 = vmatpush1.xpose.msra.mxu0 0.0
    %342 = vmatprep.subr.mxu0 0.0
    %343 = vmatpush1.xpose.msra.mxu0 0.0
    %344 = vmatprep.subr.mxu0 0.0
    %345 = vmatpush1.xpose.msra.mxu0 0.0
    %346 = vmatprep.subr.mxu0 0.0
    %347 = vmatpush1.xpose.msra.mxu0 0.0
    %348 = vmatprep.subr.mxu0 0.0
    %349 = vmatpush1.xpose.msra.mxu0 0.0
    %350 = vmatprep.subr.mxu0 0.0
    %351 = vmatpush1.xpose.msra.mxu0 0.0
    %352 = vmatprep.subr.mxu0 0.0
    %353 = vmatpush1.xpose.msra.mxu0 0.0
    %354 = vmatprep.subr.mxu0 0.0
    %355 = vmatpush1.xpose.msra.mxu0 0.0
    %356 = vmatprep.subr.mxu0 0.0
    %357 = vmatpush1.xpose.msra.mxu0 0.0
    %358 = vmatprep.subr.mxu0 0.0
    %359 = vmatpush1.xpose.msra.mxu0 0.0
    %360 = vmatprep.subr.mxu0 0.0
    %361 = vmatpush1.xpose.msra.mxu0 0.0
    %362 = vmatprep.subr.mxu0 0.0
    %363 = vmatpush1.xpose.msra.mxu0 0.0
    %364 = vmatprep.subr.mxu0 0.0
    %365 = vmatpush1.xpose.msra.mxu0 0.0
    %366 = vmatprep.subr.mxu0 0.0
    %367 = vmatpush1.xpose.msra.mxu0 0.0
    %368 = vmatprep.subr.mxu0 0.0
    %369 = vmatpush1.xpose.msra.mxu0 0.0
    %370 = vmatprep.subr.mxu0 0.0
    %371 = vmatpush1.xpose.msra.mxu0 0.0
    %372 = vmatprep.subr.mxu0 0.0
    %373 = vmatpush1.xpose.msra.mxu0 0.0
    %374 = vmatprep.subr.mxu0 0.0
    %375 = vmatpush1.xpose.msra.mxu0 0.0
    %376 = vmatprep.subr.mxu0 0.0
    %377 = vmatpush1.xpose.msra.mxu0 0.0
    %378 = vmatprep.subr.mxu0 0.0
    %379 = vmatpush1.xpose.msra.mxu0 0.0
    %380 = vmatprep.subr.mxu0 0.0
    %381 = vmatpush1.xpose.msra.mxu0 0.0
    %382 = vmatprep.subr.mxu0 0.0
    %383 = vmatpush1.xpose.msra.mxu0 0.0
    %384 = vmatprep.subr.mxu0 0.0
    %385 = vmatpush1.xpose.msra.mxu0 0.0
    %386 = vmatprep.subr.mxu0 0.0
    %387 = vmatpush1.xpose.msra.mxu0 0.0
    %388 = vmatprep.subr.mxu0 0.0
    %389 = vmatpush1.xpose.msra.mxu0 0.0
    %390 = vmatprep.subr.mxu0 0.0
    %391 = vmatpush1.xpose.msra.mxu0 0.0
    %392 = vmatprep.subr.mxu0 0.0
    %393 = vmatpush1.xpose.msra.mxu0 0.0
    %394 = vmatprep.subr.mxu0 0.0
    %395 = vmatpush1.xpose.msra.mxu0 0.0
    %396 = vmatprep.subr.mxu0 0.0
    %397 = vmatpush1.xpose.msra.mxu0 0.0
    %398 = vmatprep.subr.mxu0 0.0
    %399 = vmatpush1.xpose.msra.mxu0 0.0
    %400 = vmatprep.subr.mxu0 0.0
    %401 = vmatpush1.xpose.msra.mxu0 0.0
    %402 = vmatprep.mubr.f32.mxu0 0.0
    %403 = vmatmul.mubr.f32.gmra.mrb[0].mxu0 %v334
    %v404 = vpop.f32.mrb[0].mxu0
    %v405 = vadd.f32 0.0, %v404
    %v406 = vpop.f32.mrb[0].mxu0
    %407 = vdwg.mxu0
    %v408 = vmul.f32 %v328, 0.17677669
    %v409 = vmul.f32 %v405, 0.17677669
    %v412 = vunpack.c.l.s4 1966171168
    %v413 = vunpack.c.0.s8 %v412
    %v414 = vlaneseq
    %v415 = vshrl.u32 %v414, 7
    %v416 = vsub.s32 %v413, %v415
    %v417 = vrot.slane %v253, %v416
    %v418 = vcombine.high %v417, %v417
    %v420 = vunpack.c.l.s4 1966171168
    %v421 = vunpack.c.0.s8 %v420
    %v422 = vlaneseq
    %v423 = vshrl.u32 %v422, 7
    %v424 = vsub.s32 %v421, %v423
    %v425 = vrot.slane %v417, %v424
    %v427 = vunpack.c.l.s4 1966171168
    %v428 = vunpack.c.0.s8 %v427
    %v429 = vlaneseq
    %v430 = vshrl.u32 %v429, 7
    %v431 = vsub.s32 %v428, %v430
    %v432 = vrot.slane %v418, %v431
    %v435 = vsub.f32 1.0, %v425
    %v436 = vsub.f32 1.0, %v432
    %v437 = vmul.f32 %v435, -1e+09
    %v438 = vmul.f32 %v436, -1e+09
    %v441 = vlaneseq
    %v442 = vshrl.u32 %v441, 7
    %v443 = vsub.s32 0, %v442
    %v444 = vrot.slane %v437, %v443
    %v445 = vlaneseq
    %v446 = vshrl.u32 %v445, 7
    %v447 = vsub.s32 0, %v446
    %v448 = vrot.slane %v438, %v447
    %v451 = vadd.f32 %v408, %v444
    %v452 = vadd.f32 %v409, %v448
    %vm453 = vcmask 64512
    %v454 = vsel %vm453, %v451, -inf
    %455 = vmax.xlane.f32.xlu0 %v454
    %v456 = vpop.xlane.xlu0 %455
    %v457 = vsel %vm453, %v452, -inf
    %458 = vmax.xlane.f32.xlu0 %v457
    %v459 = vpop.xlane.xlu0 %458
    %v460 = vsub.f32 %v451, %v456
    %v461 = vsub.f32 %v452, %v459
    %v462 = vmul.f32 %v460, 1.442695
    %v463 = vpow.pop %v462
    %v464 = vmul.f32 %v461, 1.442695
    %v465 = vpow.pop %v464
    %v466 = vsel %vm453, %v463, 0.0
    %467 = vadd.xlane.f32.xlu0 %v466
    %v468 = vpop.xlane.xlu0 %467
    %v469 = vsel %vm453, %v465, 0.0
    %470 = vadd.xlane.f32.xlu0 %v469
    %v471 = vpop.xlane.xlu0 %470
    %v472 = vrcp.pop %v468
    %v473 = vrcp.pop %v471
    %v474 = vmul.f32 %v463, %v472
    %v475 = vmul.f32 %v465, %v473
    %476 = vrot.lane.b32.xlu0 %v245, 64
    %v477 = vpop.permute.xlu0 %476
    %v480 = vsel %vm453, %v474, 0
    %482 = vmatprep.subr.mxu0 0.0
    %483 = vmatpush1.msra.mxu0 %v477
    %484 = vmatprep.subr.mxu0 0.0
    %485 = vmatpush1.msra.mxu0 0.0
    %486 = vmatprep.subr.mxu0 0.0
    %487 = vmatpush1.msra.mxu0 0.0
    %488 = vmatprep.subr.mxu0 0.0
    %489 = vmatpush1.msra.mxu0 0.0
    %490 = vmatprep.subr.mxu0 0.0
    %491 = vmatpush1.msra.mxu0 0.0
    %492 = vmatprep.subr.mxu0 0.0
    %493 = vmatpush1.msra.mxu0 0.0
    %494 = vmatprep.subr.mxu0 0.0
    %495 = vmatpush1.msra.mxu0 0.0
    %496 = vmatprep.subr.mxu0 0.0
    %497 = vmatpush1.msra.mxu0 0.0
    %498 = vmatprep.subr.mxu0 0.0
    %499 = vmatpush1.msra.mxu0 0.0
    %500 = vmatprep.subr.mxu0 0.0
    %501 = vmatpush1.msra.mxu0 0.0
    %502 = vmatprep.subr.mxu0 0.0
    %503 = vmatpush1.msra.mxu0 0.0
    %504 = vmatprep.subr.mxu0 0.0
    %505 = vmatpush1.msra.mxu0 0.0
    %506 = vmatprep.subr.mxu0 0.0
    %507 = vmatpush1.msra.mxu0 0.0
    %508 = vmatprep.subr.mxu0 0.0
    %509 = vmatpush1.msra.mxu0 0.0
    %510 = vmatprep.subr.mxu0 0.0
    %511 = vmatpush1.msra.mxu0 0.0
    %512 = vmatprep.subr.mxu0 0.0
    %513 = vmatpush1.msra.mxu0 0.0
    %514 = vmatprep.subr.mxu0 0.0
    %515 = vmatpush1.msra.mxu0 0.0
    %516 = vmatprep.subr.mxu0 0.0
    %517 = vmatpush1.msra.mxu0 0.0
    %518 = vmatprep.subr.mxu0 0.0
    %519 = vmatpush1.msra.mxu0 0.0
    %520 = vmatprep.subr.mxu0 0.0
    %521 = vmatpush1.msra.mxu0 0.0
    %522 = vmatprep.subr.mxu0 0.0
    %523 = vmatpush1.msra.mxu0 0.0
    %524 = vmatprep.subr.mxu0 0.0
    %525 = vmatpush1.msra.mxu0 0.0
    %526 = vmatprep.subr.mxu0 0.0
    %527 = vmatpush1.msra.mxu0 0.0
    %528 = vmatprep.subr.mxu0 0.0
    %529 = vmatpush1.msra.mxu0 0.0
    %530 = vmatprep.subr.mxu0 0.0
    %531 = vmatpush1.msra.mxu0 0.0
    %532 = vmatprep.subr.mxu0 0.0
    %533 = vmatpush1.msra.mxu0 0.0
    %534 = vmatprep.subr.mxu0 0.0
    %535 = vmatpush1.msra.mxu0 0.0
    %536 = vmatprep.subr.mxu0 0.0
    %537 = vmatpush1.msra.mxu0 0.0
    %538 = vmatprep.subr.mxu0 0.0
    %539 = vmatpush1.msra.mxu0 0.0
    %540 = vmatprep.subr.mxu0 0.0
    %541 = vmatpush1.msra.mxu0 0.0
    %542 = vmatprep.subr.mxu0 0.0
    %543 = vmatpush1.msra.mxu0 0.0
    %544 = vmatprep.subr.mxu0 0.0
    %545 = vmatpush1.msra.mxu0 0.0
    %546 = vmatprep.mubr.f32.mxu0 0.0
    %547 = vmatmul.mubr.f32.gmra.mrb[0].mxu0 %v480
    %v548 = vpop.f32.mrb[0].mxu0
    %v549 = vadd.f32 0.0, %v548
    %v550 = vpop.f32.mrb[0].mxu0
    %551 = vdwg.mxu0
    %552 = vrot.lane.b32.xlu0 %v250, 64
    %v553 = vpop.permute.xlu0 %552
    %v556 = vsel %vm453, %v475, 0
    %558 = vmatprep.subr.mxu0 0.0
    %559 = vmatpush1.msra.mxu0 %v553
    %560 = vmatprep.subr.mxu0 0.0
    %561 = vmatpush1.msra.mxu0 0.0
    %562 = vmatprep.subr.mxu0 0.0
    %563 = vmatpush1.msra.mxu0 0.0
    %564 = vmatprep.subr.mxu0 0.0
    %565 = vmatpush1.msra.mxu0 0.0
    %566 = vmatprep.subr.mxu0 0.0
    %567 = vmatpush1.msra.mxu0 0.0
    %568 = vmatprep.subr.mxu0 0.0
    %569 = vmatpush1.msra.mxu0 0.0
    %570 = vmatprep.subr.mxu0 0.0
    %571 = vmatpush1.msra.mxu0 0.0
    %572 = vmatprep.subr.mxu0 0.0
    %573 = vmatpush1.msra.mxu0 0.0
    %574 = vmatprep.subr.mxu0 0.0
    %575 = vmatpush1.msra.mxu0 0.0
    %576 = vmatprep.subr.mxu0 0.0
    %577 = vmatpush1.msra.mxu0 0.0
    %578 = vmatprep.subr.mxu0 0.0
    %579 = vmatpush1.msra.mxu0 0.0
    %580 = vmatprep.subr.mxu0 0.0
    %581 = vmatpush1.msra.mxu0 0.0
    %582 = vmatprep.subr.mxu0 0.0
    %583 = vmatpush1.msra.mxu0 0.0
    %584 = vmatprep.subr.mxu0 0.0
    %585 = vmatpush1.msra.mxu0 0.0
    %586 = vmatprep.subr.mxu0 0.0
    %587 = vmatpush1.msra.mxu0 0.0
    %588 = vmatprep.subr.mxu0 0.0
    %589 = vmatpush1.msra.mxu0 0.0
    %590 = vmatprep.subr.mxu0 0.0
    %591 = vmatpush1.msra.mxu0 0.0
    %592 = vmatprep.subr.mxu0 0.0
    %593 = vmatpush1.msra.mxu0 0.0
    %594 = vmatprep.subr.mxu0 0.0
    %595 = vmatpush1.msra.mxu0 0.0
    %596 = vmatprep.subr.mxu0 0.0
    %597 = vmatpush1.msra.mxu0 0.0
    %598 = vmatprep.subr.mxu0 0.0
    %599 = vmatpush1.msra.mxu0 0.0
    %600 = vmatprep.subr.mxu0 0.0
    %601 = vmatpush1.msra.mxu0 0.0
    %602 = vmatprep.subr.mxu0 0.0
    %603 = vmatpush1.msra.mxu0 0.0
    %604 = vmatprep.subr.mxu0 0.0
    %605 = vmatpush1.msra.mxu0 0.0
    %606 = vmatprep.subr.mxu0 0.0
    %607 = vmatpush1.msra.mxu0 0.0
    %608 = vmatprep.subr.mxu0 0.0
    %609 = vmatpush1.msra.mxu0 0.0
    %610 = vmatprep.subr.mxu0 0.0
    %611 = vmatpush1.msra.mxu0 0.0
    %612 = vmatprep.subr.mxu0 0.0
    %613 = vmatpush1.msra.mxu0 0.0
    %614 = vmatprep.subr.mxu0 0.0
    %615 = vmatpush1.msra.mxu0 0.0
    %616 = vmatprep.subr.mxu0 0.0
    %617 = vmatpush1.msra.mxu0 0.0
    %618 = vmatprep.subr.mxu0 0.0
    %619 = vmatpush1.msra.mxu0 0.0
    %620 = vmatprep.subr.mxu0 0.0
    %621 = vmatpush1.msra.mxu0 0.0
    %622 = vmatprep.mubr.f32.mxu0 0.0
    %623 = vmatmul.mubr.f32.gmra.mrb[0].mxu0 %v556
    %v624 = vpop.f32.mrb[0].mxu0
    %v625 = vadd.f32 0.0, %v624
    %v626 = vpop.f32.mrb[0].mxu0
    %627 = vdwg.mxu0
    %v628 = vld [vmem:[#allocation4 + $0x88] sm:$0xff]
    %v629 = vld [vmem:[#allocation4 + $0x90] sm:$0xff]
    %v630 = vld [vmem:[#allocation4 + $0x98] sm:$0xff]
    %v631 = vld [vmem:[#allocation4 + $0xa0] sm:$0xff]
    %v632 = vld [vmem:[#allocation4 + $0xa8] sm:$0x1]
    %v633 = vlaneseq
    %v634 = vshrl.u32 %v633, 7
    %v635 = vsub.s32 0, %v634
    %v636 = vrot.slane %v632, %v635
    %v638 = vsel %vm171, %v549, 0
    %v641 = vsel %vm171, %v625, 0
    %643 = vmatprep.subr.mxu0 0.0
    %644 = vmatpush1.msra.mxu0 %v628
    %645 = vmatprep.subr.mxu0 0.0
    %646 = vmatpush1.msra.mxu0 %v629
    %647 = vmatprep.subr.mxu0 0.0
    %648 = vmatpush1.msra.mxu0 %v630
    %649 = vmatprep.subr.mxu0 0.0
    %650 = vmatpush1.msra.mxu0 %v631
    %651 = vmatprep.subr.mxu0 0.0
    %652 = vmatpush1.msra.mxu0 0.0
    %653 = vmatprep.subr.mxu0 0.0
    %654 = vmatpush1.msra.mxu0 0.0
    %655 = vmatprep.subr.mxu0 0.0
    %656 = vmatpush1.msra.mxu0 0.0
    %657 = vmatprep.subr.mxu0 0.0
    %658 = vmatpush1.msra.mxu0 0.0
    %659 = vmatprep.subr.mxu0 0.0
    %660 = vmatpush1.msra.mxu0 0.0
    %661 = vmatprep.subr.mxu0 0.0
    %662 = vmatpush1.msra.mxu0 0.0
    %663 = vmatprep.subr.mxu0 0.0
    %664 = vmatpush1.msra.mxu0 0.0
    %665 = vmatprep.subr.mxu0 0.0
    %666 = vmatpush1.msra.mxu0 0.0
    %667 = vmatprep.subr.mxu0 0.0
    %668 = vmatpush1.msra.mxu0 0.0
    %669 = vmatprep.subr.mxu0 0.0
    %670 = vmatpush1.msra.mxu0 0.0
    %671 = vmatprep.subr.mxu0 0.0
    %672 = vmatpush1.msra.mxu0 0.0
    %673 = vmatprep.subr.mxu0 0.0
    %674 = vmatpush1.msra.mxu0 0.0
    %675 = vmatprep.subr.mxu0 0.0
    %676 = vmatpush1.msra.mxu0 0.0
    %677 = vmatprep.subr.mxu0 0.0
    %678 = vmatpush1.msra.mxu0 0.0
    %679 = vmatprep.subr.mxu0 0.0
    %680 = vmatpush1.msra.mxu0 0.0
    %681 = vmatprep.subr.mxu0 0.0
    %682 = vmatpush1.msra.mxu0 0.0
    %683 = vmatprep.subr.mxu0 0.0
    %684 = vmatpush1.msra.mxu0 0.0
    %685 = vmatprep.subr.mxu0 0.0
    %686 = vmatpush1.msra.mxu0 0.0
    %687 = vmatprep.subr.mxu0 0.0
    %688 = vmatpush1.msra.mxu0 0.0
    %689 = vmatprep.subr.mxu0 0.0
    %690 = vmatpush1.msra.mxu0 0.0
    %691 = vmatprep.subr.mxu0 0.0
    %692 = vmatpush1.msra.mxu0 0.0
    %693 = vmatprep.subr.mxu0 0.0
    %694 = vmatpush1.msra.mxu0 0.0
    %695 = vmatprep.subr.mxu0 0.0
    %696 = vmatpush1.msra.mxu0 0.0
    %697 = vmatprep.subr.mxu0 0.0
    %698 = vmatpush1.msra.mxu0 0.0
    %699 = vmatprep.subr.mxu0 0.0
    %700 = vmatpush1.msra.mxu0 0.0
    %701 = vmatprep.subr.mxu0 0.0
    %702 = vmatpush1.msra.mxu0 0.0
    %703 = vmatprep.subr.mxu0 0.0
    %704 = vmatpush1.msra.mxu0 0.0
    %705 = vmatprep.subr.mxu0 0.0
    %706 = vmatpush1.msra.mxu0 0.0
    %707 = vmatprep.mubr.f32.mxu0 0.0
    %708 = vmatmul.mubr.f32.gmra.mrb[0].mxu0 %v638
    %v709 = vpop.f32.mrb[0].mxu0
    %v710 = vadd.f32 %v636, %v709
    %v711 = vpop.f32.mrb[0].mxu0
    %712 = vmatprep.mubr.f32.mxu0 0.0
    %713 = vmatmul.mubr.f32.gmra.mrb[0].mxu0 %v641
    %v714 = vpop.f32.mrb[0].mxu0
    %v715 = vadd.f32 %v636, %v714
    %v716 = vpop.f32.mrb[0].mxu0
    %717 = vdwg.mxu0
    %v718 = vadd.f32 %v160, %v710
    %v719 = vadd.f32 %v161, %v715
    %v720 = vld [vmem:[#allocation4 + $0xb0] sm:$0x1]
    %v721 = vld [vmem:[#allocation4 + $0xb8] sm:$0x1]
    %v722 = vsel %vm171, %v718, 0.0
    %723 = vadd.xlane.f32.xlu0 %v722
    %v724 = vpop.xlane.xlu0 %723
    %v725 = vsel %vm171, %v719, 0.0
    %726 = vadd.xlane.f32.xlu0 %v725
    %v727 = vpop.xlane.xlu0 %726
    %v728 = vrcp.pop 32.0
    %v729 = vmul.f32 %v724, %v728
    %v730 = vmul.f32 %v727, %v728
    %v731 = vsub.f32 %v718, %v729
    %v732 = vsub.f32 %v719, %v730
    %v733 = vmul.f32 %v731, %v731
    %v734 = vmul.f32 %v732, %v732
    %v735 = vsel %vm171, %v733, 0.0
    %736 = vadd.xlane.f32.xlu0 %v735
    %v737 = vpop.xlane.xlu0 %736
    %v738 = vsel %vm171, %v734, 0.0
    %739 = vadd.xlane.f32.xlu0 %v738
    %v740 = vpop.xlane.xlu0 %739
    %v741 = vmul.f32 %v737, %v728
    %v742 = vmul.f32 %v740, %v728
    %v743 = vadd.f32 %v741, 1e-05
    %v744 = vadd.f32 %v742, 1e-05
    %v745 = vrsqrt.pop %v743
    %v746 = vrsqrt.pop %v744
    %v747 = vmul.f32 %v731, %v745
    %v748 = vmul.f32 %v732, %v746
    %v749 = vlaneseq
    %v750 = vshrl.u32 %v749, 7
    %v751 = vsub.s32 0, %v750
    %v752 = vrot.slane %v720, %v751
    %v753 = vmul.f32 %v747, %v752
    %v754 = vmul.f32 %v748, %v752
    %v755 = vlaneseq
    %v756 = vshrl.u32 %v755, 7
    %v757 = vsub.s32 0, %v756
    %v758 = vrot.slane %v721, %v757
    %v759 = vadd.f32 %v753, %v758
    %v760 = vadd.f32 %v754, %v758
    %v761 = vld [vmem:[#allocation4 + $0xc0] sm:$0xff]
    %v762 = vld [vmem:[#allocation4 + $0xc8] sm:$0xff]
    %v763 = vld [vmem:[#allocation4 + $0xd0] sm:$0xff]
    %v764 = vld [vmem:[#allocation4 + $0xd8] sm:$0xff]
    %v765 = vld [vmem:[#allocation4 + $0xe0] sm:$0x1]
    %v766 = vlaneseq
    %v767 = vshrl.u32 %v766, 7
    %v768 = vsub.s32 0, %v767
    %v769 = vrot.slane %v765, %v768
    %v771 = vsel %vm171, %v759, 0
    %v774 = vsel %vm171, %v760, 0
    %776 = vmatprep.subr.mxu0 0.0
    %777 = vmatpush1.msra.mxu0 %v761
    %778 = vmatprep.subr.mxu0 0.0
    %779 = vmatpush1.msra.mxu0 %v762
    %780 = vmatprep.subr.mxu0 0.0
    %781 = vmatpush1.msra.mxu0 %v763
    %782 = vmatprep.subr.mxu0 0.0
    %783 = vmatpush1.msra.mxu0 %v764
    %784 = vmatprep.subr.mxu0 0.0
    %785 = vmatpush1.msra.mxu0 0.0
    %786 = vmatprep.subr.mxu0 0.0
    %787 = vmatpush1.msra.mxu0 0.0
    %788 = vmatprep.subr.mxu0 0.0
    %789 = vmatpush1.msra.mxu0 0.0
    %790 = vmatprep.subr.mxu0 0.0
    %791 = vmatpush1.msra.mxu0 0.0
    %792 = vmatprep.subr.mxu0 0.0
    %793 = vmatpush1.msra.mxu0 0.0
    %794 = vmatprep.subr.mxu0 0.0
    %795 = vmatpush1.msra.mxu0 0.0
    %796 = vmatprep.subr.mxu0 0.0
    %797 = vmatpush1.msra.mxu0 0.0
    %798 = vmatprep.subr.mxu0 0.0
    %799 = vmatpush1.msra.mxu0 0.0
    %800 = vmatprep.subr.mxu0 0.0
    %801 = vmatpush1.msra.mxu0 0.0
    %802 = vmatprep.subr.mxu0 0.0
    %803 = vmatpush1.msra.mxu0 0.0
    %804 = vmatprep.subr.mxu0 0.0
    %805 = vmatpush1.msra.mxu0 0.0
    %806 = vmatprep.subr.mxu0 0.0
    %807 = vmatpush1.msra.mxu0 0.0
    %808 = vmatprep.subr.mxu0 0.0
    %809 = vmatpush1.msra.mxu0 0.0
    %810 = vmatprep.subr.mxu0 0.0
    %811 = vmatpush1.msra.mxu0 0.0
    %812 = vmatprep.subr.mxu0 0.0
    %813 = vmatpush1.msra.mxu0 0.0
    %814 = vmatprep.subr.mxu0 0.0
    %815 = vmatpush1.msra.mxu0 0.0
    %816 = vmatprep.subr.mxu0 0.0
    %817 = vmatpush1.msra.mxu0 0.0
    %818 = vmatprep.subr.mxu0 0.0
    %819 = vmatpush1.msra.mxu0 0.0
    %820 = vmatprep.subr.mxu0 0.0
    %821 = vmatpush1.msra.mxu0 0.0
    %822 = vmatprep.subr.mxu0 0.0
    %823 = vmatpush1.msra.mxu0 0.0
    %824 = vmatprep.subr.mxu0 0.0
    %825 = vmatpush1.msra.mxu0 0.0
    %826 = vmatprep.subr.mxu0 0.0
    %827 = vmatpush1.msra.mxu0 0.0
    %828 = vmatprep.subr.mxu0 0.0
    %829 = vmatpush1.msra.mxu0 0.0
    %830 = vmatprep.subr.mxu0 0.0
    %831 = vmatpush1.msra.mxu0 0.0
    %832 = vmatprep.subr.mxu0 0.0
    %833 = vmatpush1.msra.mxu0 0.0
    %834 = vmatprep.subr.mxu0 0.0
    %835 = vmatpush1.msra.mxu0 0.0
    %836 = vmatprep.subr.mxu0 0.0
    %837 = vmatpush1.msra.mxu0 0.0
    %838 = vmatprep.subr.mxu0 0.0
    %839 = vmatpush1.msra.mxu0 0.0
    %840 = vmatprep.mubr.f32.mxu0 0.0
    %841 = vmatmul.mubr.f32.gmra.mrb[0].mxu0 %v771
    %v842 = vpop.f32.mrb[0].mxu0
    %v843 = vadd.f32 %v769, %v842
    %v844 = vpop.f32.mrb[0].mxu0
    %845 = vmatprep.mubr.f32.mxu0 0.0
    %846 = vmatmul.mubr.f32.gmra.mrb[0].mxu0 %v774
    %v847 = vpop.f32.mrb[0].mxu0
    %v848 = vadd.f32 %v769, %v847
    %v849 = vpop.f32.mrb[0].mxu0
    %850 = vdwg.mxu0
    %v851 = vmul.f32 %v843, %v843
    %v852 = vmul.f32 %v848, %v848
    %v853 = vmul.f32 %v843, %v851
    %v854 = vmul.f32 %v848, %v852
    %v855 = vmul.f32 %v853, 0.044715
    %v856 = vmul.f32 %v854, 0.044715
    %v857 = vadd.f32 %v843, %v855
    %v858 = vadd.f32 %v848, %v856
    %v859 = vmul.f32 %v857, 0.7978846
    %v860 = vmul.f32 %v858, 0.7978846
    %v861 = vtanh.pop %v859
    %v862 = vtanh.pop %v860
    %v863 = vadd.f32 %v861, 1.0
    %v864 = vadd.f32 %v862, 1.0
    %v865 = vmul.f32 %v863, 0.5
    %v866 = vmul.f32 %v864, 0.5
    %v867 = vmul.f32 %v843, %v865
    %v868 = vmul.f32 %v848, %v866
    %v869 = vld [vmem:[#allocation4 + $0xe8] sm:$0xff]
    %v870 = vld [vmem:[#allocation4 + $0xf0] sm:$0xff]
    %v871 = vld [vmem:[#allocation4 + $0xf8] sm:$0xff]
    %v872 = vld [vmem:[#allocation4 + $0x100] sm:$0xff]
    %v873 = vld [vmem:[#allocation4 + $0x108] sm:$0xff]
    %v874 = vld [vmem:[#allocation4 + $0x110] sm:$0xff]
    %v875 = vld [vmem:[#allocation4 + $0x118] sm:$0xff]
    %v876 = vld [vmem:[#allocation4 + $0x120] sm:$0xff]
    %v877 = vld [vmem:[#allocation4 + $0x128] sm:$0x1]
    %v878 = vlaneseq
    %v879 = vshrl.u32 %v878, 7
    %v880 = vsub.s32 0, %v879
    %v881 = vrot.slane %v877, %v880
    %v883 = vsel %vm77, %v867, 0
    %v886 = vsel %vm77, %v868, 0
    %888 = vmatprep.subr.mxu0 0.0
    %889 = vmatpush1.msra.mxu0 %v869
    %890 = vmatprep.subr.mxu0 0.0
    %891 = vmatpush1.msra.mxu0 %v870
    %892 = vmatprep.subr.mxu0 0.0
    %893 = vmatpush1.msra.mxu0 %v871
    %894 = vmatprep.subr.mxu0 0.0
    %895 = vmatpush1.msra.mxu0 %v872
    %896 = vmatprep.subr.mxu0 0.0
    %897 = vmatpush1.msra.mxu0 %v873
    %898 = vmatprep.subr.mxu0 0.0
    %899 = vmatpush1.msra.mxu0 %v874
    %900 = vmatprep.subr.mxu0 0.0
    %901 = vmatpush1.msra.mxu0 %v875
    %902 = vmatprep.subr.mxu0 0.0
    %903 = vmatpush1.msra.mxu0 %v876
    %904 = vmatprep.subr.mxu0 0.0
    %905 = vmatpush1.msra.mxu0 0.0
    %906 = vmatprep.subr.mxu0 0.0
    %907 = vmatpush1.msra.mxu0 0.0
    %908 = vmatprep.subr.mxu0 0.0
    %909 = vmatpush1.msra.mxu0 0.0
    %910 = vmatprep.subr.mxu0 0.0
    %911 = vmatpush1.msra.mxu0 0.0
    %912 = vmatprep.subr.mxu0 0.0
    %913 = vmatpush1.msra.mxu0 0.0
    %914 = vmatprep.subr.mxu0 0.0
    %915 = vmatpush1.msra.mxu0 0.0
    %916 = vmatprep.subr.mxu0 0.0
    %917 = vmatpush1.msra.mxu0 0.0
    %918 = vmatprep.subr.mxu0 0.0
    %919 = vmatpush1.msra.mxu0 0.0
    %920 = vmatprep.subr.mxu0 0.0
    %921 = vmatpush1.msra.mxu0 0.0
    %922 = vmatprep.subr.mxu0 0.0
    %923 = vmatpush1.msra.mxu0 0.0
    %924 = vmatprep.subr.mxu0 0.0
    %925 = vmatpush1.msra.mxu0 0.0
    %926 = vmatprep.subr.mxu0 0.0
    %927 = vmatpush1.msra.mxu0 0.0
    %928 = vmatprep.subr.mxu0 0.0
    %929 = vmatpush1.msra.mxu0 0.0
    %930 = vmatprep.subr.mxu0 0.0
    %931 = vmatpush1.msra.mxu0 0.0
    %932 = vmatprep.subr.mxu0 0.0
    %933 = vmatpush1.msra.mxu0 0.0
    %934 = vmatprep.subr.mxu0 0.0
    %935 = vmatpush1.msra.mxu0 0.0
    %936 = vmatprep.subr.mxu0 0.0
    %937 = vmatpush1.msra.mxu0 0.0
    %938 = vmatprep.subr.mxu0 0.0
    %939 = vmatpush1.msra.mxu0 0.0
    %940 = vmatprep.subr.mxu0 0.0
    %941 = vmatpush1.msra.mxu0 0.0
    %942 = vmatprep.subr.mxu0 0.0
    %943 = vmatpush1.msra.mxu0 0.0
    %944 = vmatprep.subr.mxu0 0.0
    %945 = vmatpush1.msra.mxu0 0.0
    %946 = vmatprep.subr.mxu0 0.0
    %947 = vmatpush1.msra.mxu0 0.0
    %948 = vmatprep.subr.mxu0 0.0
    %949 = vmatpush1.msra.mxu0 0.0
    %950 = vmatprep.subr.mxu0 0.0
    %951 = vmatpush1.msra.mxu0 0.0
    %952 = vmatprep.mubr.f32.mxu0 0.0
    %953 = vmatmul.mubr.f32.gmra.mrb[0].mxu0 %v883
    %v954 = vpop.f32.mrb[0].mxu0
    %v955 = vadd.f32 %v881, %v954
    %v956 = vpop.f32.mrb[0].mxu0
    %957 = vmatprep.mubr.f32.mxu0 0.0
    %958 = vmatmul.mubr.f32.gmra.mrb[0].mxu0 %v886
    %v959 = vpop.f32.mrb[0].mxu0
    %v960 = vadd.f32 %v881, %v959
    %v961 = vpop.f32.mrb[0].mxu0
    %962 = vdwg.mxu0
    %v963 = vadd.f32 %v759, %v955
    %v964 = vadd.f32 %v760, %v960
    %v965 = vld [vmem:[#allocation4 + $0x130] sm:$0x1]
    %v966 = vld [vmem:[#allocation4 + $0x138] sm:$0x1]
    %v967 = vsel %vm171, %v963, 0.0
    %968 = vadd.xlane.f32.xlu0 %v967
    %v969 = vpop.xlane.xlu0 %968
    %v970 = vsel %vm171, %v964, 0.0
    %971 = vadd.xlane.f32.xlu0 %v970
    %v972 = vpop.xlane.xlu0 %971
    %v973 = vmul.f32 %v969, %v728
    %v974 = vmul.f32 %v972, %v728
    %v975 = vsub.f32 %v963, %v973
    %v976 = vsub.f32 %v964, %v974
    %v977 = vmul.f32 %v975, %v975
    %v978 = vmul.f32 %v976, %v976
    %v979 = vsel %vm171, %v977, 0.0
    %980 = vadd.xlane.f32.xlu0 %v979
    %v981 = vpop.xlane.xlu0 %980
    %v982 = vsel %vm171, %v978, 0.0
    %983 = vadd.xlane.f32.xlu0 %v982
    %v984 = vpop.xlane.xlu0 %983
    %v985 = vmul.f32 %v981, %v728
    %v986 = vmul.f32 %v984, %v728
    %v987 = vadd.f32 %v985, 1e-05
    %v988 = vadd.f32 %v986, 1e-05
    %v989 = vrsqrt.pop %v987
    %v990 = vrsqrt.pop %v988
    %v991 = vmul.f32 %v975, %v989
    %v992 = vmul.f32 %v976, %v990
    %v993 = vlaneseq
    %v994 = vshrl.u32 %v993, 7
    %v995 = vsub.s32 0, %v994
    %v996 = vrot.slane %v965, %v995
    %v997 = vmul.f32 %v991, %v996
    %v998 = vmul.f32 %v992, %v996
    %v999 = vlaneseq
    %v1000 = vshrl.u32 %v999, 7
    %v1001 = vsub.s32 0, %v1000
    %v1002 = vrot.slane %v966, %v1001
    %v1003 = vadd.f32 %v997, %v1002
    %v1004 = vadd.f32 %v998, %v1002
    %v1005 = vld [vmem:[#allocation4 + $0x140] sm:$0xff]
    %v1006 = vld [vmem:[#allocation4 + $0x148] sm:$0xff]
    %v1007 = vld [vmem:[#allocation4 + $0x150] sm:$0xff]
    %v1008 = vld [vmem:[#allocation4 + $0x158] sm:$0xff]
    %v1009 = vld [vmem:[#allocation4 + $0x160] sm:$0x1]
    %v1010 = vlaneseq
    %v1011 = vshrl.u32 %v1010, 7
    %v1012 = vsub.s32 0, %v1011
    %v1013 = vrot.slane %v1009, %v1012
    %v1016 = vrot.slane %v1004, 7
    %vm1017 = vcmask 1041409
    %v1018 = vsel %vm1017, %v1016, %v1003
    %v1019 = vsel %vm171, %v1018, 0
    %1021 = vmatprep.subr.mxu0 0.0
    %1022 = vmatpush1.msra.mxu0 %v1005
    %1023 = vmatprep.subr.mxu0 0.0
    %1024 = vmatpush1.msra.mxu0 %v1006
    %1025 = vmatprep.subr.mxu0 0.0
    %1026 = vmatpush1.msra.mxu0 %v1007
    %1027 = vmatprep.subr.mxu0 0.0
    %1028 = vmatpush1.msra.mxu0 %v1008
    %1029 = vmatprep.subr.mxu0 0.0
    %1030 = vmatpush1.msra.mxu0 0.0
    %1031 = vmatprep.subr.mxu0 0.0
    %1032 = vmatpush1.msra.mxu0 0.0
    %1033 = vmatprep.subr.mxu0 0.0
    %1034 = vmatpush1.msra.mxu0 0.0
    %1035 = vmatprep.subr.mxu0 0.0
    %1036 = vmatpush1.msra.mxu0 0.0
    %1037 = vmatprep.subr.mxu0 0.0
    %1038 = vmatpush1.msra.mxu0 0.0
    %1039 = vmatprep.subr.mxu0 0.0
    %1040 = vmatpush1.msra.mxu0 0.0
    %1041 = vmatprep.subr.mxu0 0.0
    %1042 = vmatpush1.msra.mxu0 0.0
    %1043 = vmatprep.subr.mxu0 0.0
    %1044 = vmatpush1.msra.mxu0 0.0
    %1045 = vmatprep.subr.mxu0 0.0
    %1046 = vmatpush1.msra.mxu0 0.0
    %1047 = vmatprep.subr.mxu0 0.0
    %1048 = vmatpush1.msra.mxu0 0.0
    %1049 = vmatprep.subr.mxu0 0.0
    %1050 = vmatpush1.msra.mxu0 0.0
    %1051 = vmatprep.subr.mxu0 0.0
    %1052 = vmatpush1.msra.mxu0 0.0
    %1053 = vmatprep.subr.mxu0 0.0
    %1054 = vmatpush1.msra.mxu0 0.0
    %1055 = vmatprep.subr.mxu0 0.0
    %1056 = vmatpush1.msra.mxu0 0.0
    %1057 = vmatprep.subr.mxu0 0.0
    %1058 = vmatpush1.msra.mxu0 0.0
    %1059 = vmatprep.subr.mxu0 0.0
    %1060 = vmatpush1.msra.mxu0 0.0
    %1061 = vmatprep.subr.mxu0 0.0
    %1062 = vmatpush1.msra.mxu0 0.0
    %1063 = vmatprep.subr.mxu0 0.0
    %1064 = vmatpush1.msra.mxu0 0.0
    %1065 = vmatprep.subr.mxu0 0.0
    %1066 = vmatpush1.msra.mxu0 0.0
    %1067 = vmatprep.subr.mxu0 0.0
    %1068 = vmatpush1.msra.mxu0 0.0
    %1069 = vmatprep.subr.mxu0 0.0
    %1070 = vmatpush1.msra.mxu0 0.0
    %1071 = vmatprep.subr.mxu0 0.0
    %1072 = vmatpush1.msra.mxu0 0.0
    %1073 = vmatprep.subr.mxu0 0.0
    %1074 = vmatpush1.msra.mxu0 0.0
    %1075 = vmatprep.subr.mxu0 0.0
    %1076 = vmatpush1.msra.mxu0 0.0
    %1077 = vmatprep.subr.mxu0 0.0
    %1078 = vmatpush1.msra.mxu0 0.0
    %1079 = vmatprep.subr.mxu0 0.0
    %1080 = vmatpush1.msra.mxu0 0.0
    %1081 = vmatprep.subr.mxu0 0.0
    %1082 = vmatpush1.msra.mxu0 0.0
    %1083 = vmatprep.subr.mxu0 0.0
    %1084 = vmatpush1.msra.mxu0 0.0
    %1085 = vmatprep.mubr.f32.mxu0 0.0
    %1086 = vmatmul.mubr.f32.gmra.mrb[0].mxu0 %v1019
    %v1087 = vpop.f32.mrb[0].mxu0
    %v1088 = vadd.f32 %v1013, %v1087
    %v1089 = vpop.f32.mrb[0].mxu0
    %1090 = vdwg.mxu0
    %v1091 = vtanh.pop %v1088
    %v1092 = vld [vmem:[#allocation4 + $0x168] sm:$0xff]
    %v1093 = vld [vmem:[#allocation4 + $0x170] sm:$0xff]
    %v1094 = vld [vmem:[#allocation4 + $0x178] sm:$0xff]
    %v1095 = vld [vmem:[#allocation4 + $0x180] sm:$0xff]
    %v1096 = vld [vmem:[#allocation4 + $0x188] sm:$0x1]
    %v1097 = vlaneseq
    %v1098 = vshrl.u32 %v1097, 7
    %v1099 = vsub.s32 0, %v1098
    %v1100 = vrot.slane %v1096, %v1099
    %v1102 = vsel %vm171, %v1091, 0
    %1104 = vmatprep.subr.mxu0 0.0
    %1105 = vmatpush1.msra.mxu0 %v1092
    %1106 = vmatprep.subr.mxu0 0.0
    %1107 = vmatpush1.msra.mxu0 %v1093
    %1108 = vmatprep.subr.mxu0 0.0
    %1109 = vmatpush1.msra.mxu0 %v1094
    %1110 = vmatprep.subr.mxu0 0.0
    %1111 = vmatpush1.msra.mxu0 %v1095
    %1112 = vmatprep.subr.mxu0 0.0
    %1113 = vmatpush1.msra.mxu0 0.0
    %1114 = vmatprep.subr.mxu0 0.0
    %1115 = vmatpush1.msra.mxu0 0.0
    %1116 = vmatprep.subr.mxu0 0.0
    %1117 = vmatpush1.msra.mxu0 0.0
    %1118 = vmatprep.subr.mxu0 0.0
    %1119 = vmatpush1.msra.mxu0 0.0
    %1120 = vmatprep.subr.mxu0 0.0
    %1121 = vmatpush1.msra.mxu0 0.0
    %1122 = vmatprep.subr.mxu0 0.0
    %1123 = vmatpush1.msra.mxu0 0.0
    %1124 = vmatprep.subr.mxu0 0.0
    %1125 = vmatpush1.msra.mxu0 0.0
    %1126 = vmatprep.subr.mxu0 0.0
    %1127 = vmatpush1.msra.mxu0 0.0
    %1128 = vmatprep.subr.mxu0 0.0
    %1129 = vmatpush1.msra.mxu0 0.0
    %1130 = vmatprep.subr.mxu0 0.0
    %1131 = vmatpush1.msra.mxu0 0.0
    %1132 = vmatprep.subr.mxu0 0.0
    %1133 = vmatpush1.msra.mxu0 0.0
    %1134 = vmatprep.subr.mxu0 0.0
    %1135 = vmatpush1.msra.mxu0 0.0
    %1136 = vmatprep.subr.mxu0 0.0
    %1137 = vmatpush1.msra.mxu0 0.0
    %1138 = vmatprep.subr.mxu0 0.0
    %1139 = vmatpush1.msra.mxu0 0.0
    %1140 = vmatprep.subr.mxu0 0.0
    %1141 = vmatpush1.msra.mxu0 0.0
    %1142 = vmatprep.subr.mxu0 0.0
    %1143 = vmatpush1.msra.mxu0 0.0
    %1144 = vmatprep.subr.mxu0 0.0
    %1145 = vmatpush1.msra.mxu0 0.0
    %1146 = vmatprep.subr.mxu0 0.0
    %1147 = vmatpush1.msra.mxu0 0.0
    %1148 = vmatprep.subr.mxu0 0.0
    %1149 = vmatpush1.msra.mxu0 0.0
    %1150 = vmatprep.subr.mxu0 0.0
    %1151 = vmatpush1.msra.mxu0 0.0
    %1152 = vmatprep.subr.mxu0 0.0
    %1153 = vmatpush1.msra.mxu0 0.0
    %1154 = vmatprep.subr.mxu0 0.0
    %1155 = vmatpush1.msra.mxu0 0.0
    %1156 = vmatprep.subr.mxu0 0.0
    %1157 = vmatpush1.msra.mxu0 0.0
    %1158 = vmatprep.subr.mxu0 0.0
    %1159 = vmatpush1.msra.mxu0 0.0
    %1160 = vmatprep.subr.mxu0 0.0
    %1161 = vmatpush1.msra.mxu0 0.0
    %1162 = vmatprep.subr.mxu0 0.0
    %1163 = vmatpush1.msra.mxu0 0.0
    %1164 = vmatprep.subr.mxu0 0.0
    %1165 = vmatpush1.msra.mxu0 0.0
    %1166 = vmatprep.subr.mxu0 0.0
    %1167 = vmatpush1.msra.mxu0 0.0
    %1168 = vmatprep.mubr.f32.mxu0 0.0
    %1169 = vmatmul.mubr.f32.gmra.mrb[0].mxu0 %v1102
    %v1170 = vpop.f32.mrb[0].mxu0
    %v1171 = vadd.f32 %v1100, %v1170
    %v1172 = vpop.f32.mrb[0].mxu0
    %1173 = vdwg.mxu0
    %v1174 = vld [vmem:[%s3] sm:$0x3]
    %v1175 = vld [vmem:[%s3 + $0x2] sm:$0x3]
    %v1176 = vld [vmem:[%s3 + $0x4] sm:$0x3]
    %v1177 = vld [vmem:[%s3 + $0x6] sm:$0x3]
    %v1178 = vld [vmem:[%s3 + $0x8] sm:$0x3]
    %v1179 = vld [vmem:[%s3 + $0xa] sm:$0x3]
    %v1180 = vld [vmem:[%s3 + $0xc] sm:$0x3]
    %v1181 = vld [vmem:[%s3 + $0xe] sm:$0x3]
    %v1182 = vld [vmem:[#allocation7] sm:$0xff]
    %v1183 = vld [vmem:[#allocation7 + $0x8] sm:$0xff]
    %v1184 = vld [vmem:[#allocation7 + $0x10] sm:$0xff]
    %v1185 = vld [vmem:[#allocation7 + $0x18] sm:$0xff]
    %v1186 = vld [vmem:[#allocation7 + $0x40] sm:$0x1]
    %v1187 = vlaneseq
    %v1188 = vshrl.u32 %v1187, 7
    %v1189 = vsub.s32 0, %v1188
    %v1190 = vrot.slane %v1186, %v1189
    %v1199 = vcombine.low %v1174, %v1175
    %v1200 = vcombine.low %v1176, %v1177
    %v1202 = vunpack.c.l.s4 1983009808
    %v1203 = vunpack.c.0.s8 %v1202
    %v1204 = vlaneseq
    %v1205 = vshrl.u32 %v1204, 7
    %v1206 = vsub.s32 %v1203, %v1205
    %v1207 = vrot.slane %v1199, %v1206
    %v1209 = vunpack.c.l.s4 1983009808
    %v1210 = vunpack.c.0.s8 %v1209
    %v1211 = vlaneseq
    %v1212 = vshrl.u32 %v1211, 7
    %v1213 = vsub.s32 %v1210, %v1212
    %v1214 = vrot.slane %v1200, %v1213
    %v1215 = vcombine.low %v1207, %v1214
    %v1216 = vcombine.low %v1178, %v1179
    %v1217 = vcombine.low %v1180, %v1181
    %v1219 = vunpack.c.l.s4 1983009808
    %v1220 = vunpack.c.0.s8 %v1219
    %v1221 = vlaneseq
    %v1222 = vshrl.u32 %v1221, 7
    %v1223 = vsub.s32 %v1220, %v1222
    %v1224 = vrot.slane %v1216, %v1223
    %v1226 = vunpack.c.l.s4 1983009808
    %v1227 = vunpack.c.0.s8 %v1226
    %v1228 = vlaneseq
    %v1229 = vshrl.u32 %v1228, 7
    %v1230 = vsub.s32 %v1227, %v1229
    %v1231 = vrot.slane %v1217, %v1230
    %v1232 = vcombine.low %v1224, %v1231
    %v1234 = vcombine.low %v1190, %v1190
    %v1236 = vunpack.c.l.s4 1983009808
    %v1237 = vunpack.c.0.s8 %v1236
    %v1238 = vlaneseq
    %v1239 = vshrl.u32 %v1238, 7
    %v1240 = vsub.s32 %v1237, %v1239
    %v1241 = vrot.slane %v1234, %v1240
    %v1242 = vcombine.low %v1241, %v1241
    %v1244 = vsel %vm171, %v1215, 0
    %v1246 = vsel %vm171, %v1232, 0
    %1248 = vmatprep.subr.mxu0 0.0
    %1249 = vmatpush1.msra.mxu0 %v1182
    %1250 = vmatprep.subr.mxu0 0.0
    %1251 = vmatpush1.msra.mxu0 %v1183
    %1252 = vmatprep.subr.mxu0 0.0
    %1253 = vmatpush1.msra.mxu0 %v1184
    %1254 = vmatprep.subr.mxu0 0.0
    %1255 = vmatpush1.msra.mxu0 %v1185
    %1256 = vmatprep.subr.mxu0 0.0
    %1257 = vmatpush1.msra.mxu0 0.0
    %1258 = vmatprep.subr.mxu0 0.0
    %1259 = vmatpush1.msra.mxu0 0.0
    %1260 = vmatprep.subr.mxu0 0.0
    %1261 = vmatpush1.msra.mxu0 0.0
    %1262 = vmatprep.subr.mxu0 0.0
    %1263 = vmatpush1.msra.mxu0 0.0
    %1264 = vmatprep.subr.mxu0 0.0
    %1265 = vmatpush1.msra.mxu0 0.0
    %1266 = vmatprep.subr.mxu0 0.0
    %1267 = vmatpush1.msra.mxu0 0.0
    %1268 = vmatprep.subr.mxu0 0.0
    %1269 = vmatpush1.msra.mxu0 0.0
    %1270 = vmatprep.subr.mxu0 0.0
    %1271 = vmatpush1.msra.mxu0 0.0
    %1272 = vmatprep.subr.mxu0 0.0
    %1273 = vmatpush1.msra.mxu0 0.0
    %1274 = vmatprep.subr.mxu0 0.0
    %1275 = vmatpush1.msra.mxu0 0.0
    %1276 = vmatprep.subr.mxu0 0.0
    %1277 = vmatpush1.msra.mxu0 0.0
    %1278 = vmatprep.subr.mxu0 0.0
    %1279 = vmatpush1.msra.mxu0 0.0
    %1280 = vmatprep.subr.mxu0 0.0
    %1281 = vmatpush1.msra.mxu0 0.0
    %1282 = vmatprep.subr.mxu0 0.0
    %1283 = vmatpush1.msra.mxu0 0.0
    %1284 = vmatprep.subr.mxu0 0.0
    %1285 = vmatpush1.msra.mxu0 0.0
    %1286 = vmatprep.subr.mxu0 0.0
    %1287 = vmatpush1.msra.mxu0 0.0
    %1288 = vmatprep.subr.mxu0 0.0
    %1289 = vmatpush1.msra.mxu0 0.0
    %1290 = vmatprep.subr.mxu0 0.0
    %1291 = vmatpush1.msra.mxu0 0.0
    %1292 = vmatprep.subr.mxu0 0.0
    %1293 = vmatpush1.msra.mxu0 0.0
    %1294 = vmatprep.subr.mxu0 0.0
    %1295 = vmatpush1.msra.mxu0 0.0
    %1296 = vmatprep.subr.mxu0 0.0
    %1297 = vmatpush1.msra.mxu0 0.0
    %1298 = vmatprep.subr.mxu0 0.0
    %1299 = vmatpush1.msra.mxu0 0.0
    %1300 = vmatprep.subr.mxu0 0.0
    %1301 = vmatpush1.msra.mxu0 0.0
    %1302 = vmatprep.subr.mxu0 0.0
    %1303 = vmatpush1.msra.mxu0 0.0
    %1304 = vmatprep.subr.mxu0 0.0
    %1305 = vmatpush1.msra.mxu0 0.0
    %1306 = vmatprep.subr.mxu0 0.0
    %1307 = vmatpush1.msra.mxu0 0.0
    %1308 = vmatprep.subr.mxu0 0.0
    %1309 = vmatpush1.msra.mxu0 0.0
    %1310 = vmatprep.subr.mxu0 0.0
    %1311 = vmatpush1.msra.mxu0 0.0
    %1312 = vmatprep.mubr.f32.mxu0 0.0
    %1313 = vmatmul.mubr.f32.gmra.mrb[0].mxu0 %v1244
    %v1314 = vpop.f32.mrb[0].mxu0
    %v1315 = vadd.f32 %v1242, %v1314
    %v1316 = vpop.f32.mrb[0].mxu0
    %1317 = vmatprep.mubr.f32.mxu0 0.0
    %1318 = vmatmul.mubr.f32.gmra.mrb[0].mxu0 %v1246
    %v1319 = vpop.f32.mrb[0].mxu0
    %v1320 = vadd.f32 %v1242, %v1319
    %v1321 = vpop.f32.mrb[0].mxu0
    %1322 = vdwg.mxu0
    %v1325 = vcombine.high %v1315, %v1315
    %v1327 = vunpack.c.l.s4 1983009808
    %v1328 = vunpack.c.0.s8 %v1327
    %v1329 = vlaneseq
    %v1330 = vshrl.u32 %v1329, 7
    %v1331 = vsub.s32 %v1328, %v1330
    %v1332 = vrot.slane %v1315, %v1331
    %v1334 = vunpack.c.l.s4 1983009808
    %v1335 = vunpack.c.0.s8 %v1334
    %v1336 = vlaneseq
    %v1337 = vshrl.u32 %v1336, 7
    %v1338 = vsub.s32 %v1335, %v1337
    %v1339 = vrot.slane %v1325, %v1338
    %v1340 = vcombine.high %v1332, %v1332
    %v1341 = vcombine.high %v1339, %v1339
    %v1342 = vcombine.high %v1320, %v1320
    %v1344 = vunpack.c.l.s4 1983009808
    %v1345 = vunpack.c.0.s8 %v1344
    %v1346 = vlaneseq
    %v1347 = vshrl.u32 %v1346, 7
    %v1348 = vsub.s32 %v1345, %v1347
    %v1349 = vrot.slane %v1320, %v1348
    %v1351 = vunpack.c.l.s4 1983009808
    %v1352 = vunpack.c.0.s8 %v1351
    %v1353 = vlaneseq
    %v1354 = vshrl.u32 %v1353, 7
    %v1355 = vsub.s32 %v1352, %v1354
    %v1356 = vrot.slane %v1342, %v1355
    %v1357 = vcombine.high %v1349, %v1349
    %v1358 = vcombine.high %v1356, %v1356
    %1367 = vst [vmem:[#allocation2] sm:$0x3] %v1332
    %1368 = vst [vmem:[#allocation2 + $0x2] sm:$0x3] %v1340
    %1369 = vst [vmem:[#allocation2 + $0x4] sm:$0x3] %v1339
    %1370 = vst [vmem:[#allocation2 + $0x6] sm:$0x3] %v1341
    %1371 = vst [vmem:[#allocation2 + $0x8] sm:$0x3] %v1349
    %1372 = vst [vmem:[#allocation2 + $0xa] sm:$0x3] %v1357
    %1373 = vst [vmem:[#allocation2 + $0xc] sm:$0x3] %v1356
    %1374 = vst [vmem:[#allocation2 + $0xe] sm:$0x3] %v1358
    %v1375 = vld [vmem:[#allocation7 + $0x20] sm:$0xff]
    %v1376 = vld [vmem:[#allocation7 + $0x28] sm:$0xff]
    %v1377 = vld [vmem:[#allocation7 + $0x30] sm:$0xff]
    %v1378 = vld [vmem:[#allocation7 + $0x38] sm:$0xff]
    %v1379 = vld [vmem:[#allocation2] sm:$0x3]
    %v1381 = vsel %vm171, 0.0, 0
    %1383 = vmatprep.subr.mxu0 0.0
    %1384 = vmatpush1.msra.mxu0 %v1375
    %1385 = vmatprep.subr.mxu0 0.0
    %1386 = vmatpush1.msra.mxu0 %v1376
    %1387 = vmatprep.subr.mxu0 0.0
    %1388 = vmatpush1.msra.mxu0 %v1377
    %1389 = vmatprep.subr.mxu0 0.0
    %1390 = vmatpush1.msra.mxu0 %v1378
    %1391 = vmatprep.subr.mxu0 0.0
    %1392 = vmatpush1.msra.mxu0 0.0
    %1393 = vmatprep.subr.mxu0 0.0
    %1394 = vmatpush1.msra.mxu0 0.0
    %1395 = vmatprep.subr.mxu0 0.0
    %1396 = vmatpush1.msra.mxu0 0.0
    %1397 = vmatprep.subr.mxu0 0.0
    %1398 = vmatpush1.msra.mxu0 0.0
    %1399 = vmatprep.subr.mxu0 0.0
    %1400 = vmatpush1.msra.mxu0 0.0
    %1401 = vmatprep.subr.mxu0 0.0
    %1402 = vmatpush1.msra.mxu0 0.0
    %1403 = vmatprep.subr.mxu0 0.0
    %1404 = vmatpush1.msra.mxu0 0.0
    %1405 = vmatprep.subr.mxu0 0.0
    %1406 = vmatpush1.msra.mxu0 0.0
    %1407 = vmatprep.subr.mxu0 0.0
    %1408 = vmatpush1.msra.mxu0 0.0
    %1409 = vmatprep.subr.mxu0 0.0
    %1410 = vmatpush1.msra.mxu0 0.0
    %1411 = vmatprep.subr.mxu0 0.0
    %1412 = vmatpush1.msra.mxu0 0.0
    %1413 = vmatprep.subr.mxu0 0.0
    %1414 = vmatpush1.msra.mxu0 0.0
    %1415 = vmatprep.subr.mxu0 0.0
    %1416 = vmatpush1.msra.mxu0 0.0
    %1417 = vmatprep.subr.mxu0 0.0
    %1418 = vmatpush1.msra.mxu0 0.0
    %1419 = vmatprep.subr.mxu0 0.0
    %1420 = vmatpush1.msra.mxu0 0.0
    %1421 = vmatprep.subr.mxu0 0.0
    %1422 = vmatpush1.msra.mxu0 0.0
    %1423 = vmatprep.subr.mxu0 0.0
    %1424 = vmatpush1.msra.mxu0 0.0
    %1425 = vmatprep.subr.mxu0 0.0
    %1426 = vmatpush1.msra.mxu0 0.0
    %1427 = vmatprep.subr.mxu0 0.0
    %1428 = vmatpush1.msra.mxu0 0.0
    %1429 = vmatprep.subr.mxu0 0.0
    %1430 = vmatpush1.msra.mxu0 0.0
    %1431 = vmatprep.subr.mxu0 0.0
    %1432 = vmatpush1.msra.mxu0 0.0
    %1433 = vmatprep.subr.mxu0 0.0
    %1434 = vmatpush1.msra.mxu0 0.0
    %1435 = vmatprep.subr.mxu0 0.0
    %1436 = vmatpush1.msra.mxu0 0.0
    %1437 = vmatprep.subr.mxu0 0.0
    %1438 = vmatpush1.msra.mxu0 0.0
    %1439 = vmatprep.subr.mxu0 0.0
    %1440 = vmatpush1.msra.mxu0 0.0
    %1441 = vmatprep.subr.mxu0 0.0
    %1442 = vmatpush1.msra.mxu0 0.0
    %1443 = vmatprep.subr.mxu0 0.0
    %1444 = vmatpush1.msra.mxu0 0.0
    %1445 = vmatprep.subr.mxu0 0.0
    %1446 = vmatpush1.msra.mxu0 0.0
    %1447 = vmatprep.mubr.f32.mxu0 0.0
    %1448 = vmatmul.mubr.f32.gmra.mrb[0].mxu0 %v1381
    %v1449 = vpop.f32.mrb[0].mxu0
    %v1450 = vadd.f32 0.0, %v1449
    %v1451 = vpop.f32.mrb[0].mxu0
    %1452 = vdwg.mxu0
    %v1453 = vadd.f32 %v1379, %v1450
    %v1454 = vxor.u32 %v1453, 2147483648
    %v1455 = vmul.f32 %v1454, 1.442695
    %v1456 = vpow.pop %v1455
    %v1457 = vadd.f32 %v1456, 1.0
    %v1458 = vrcp.pop %v1457
    %v1459 = vmul.f32 1.0, %v1458
    %v1460 = vtanh.pop %v1453
    %1462 = vrot.lane.b32.xlu0 %v1460, 64
    %v1463 = vpop.permute.xlu0 %1462
    %v1465 = vmul.f32 %v1459, %v1463
    %v1466 = vmul.f32 %v1459, 0.0
    %1468 = vrot.lane.b32.xlu0 %v1466, 32
    %v1469 = vpop.permute.xlu0 %1468
    %v1471 = vadd.f32 %v1465, %v1469
    %v1472 = vtanh.pop %v1471
    %1474 = vrot.lane.b32.xlu0 %v1472, 32
    %v1475 = vpop.permute.xlu0 %1474
    %v1477 = vmul.f32 %v1459, %v1475
    %s1478 = scalar_lea.vmem [#allocation2], 2
    %v1479 = vld [vmem:[%s1478] sm:$0x3]
    %1481 = vrot.lane.b32.xlu0 %v1477, 96
    %v1482 = vpop.permute.xlu0 %1481
    %v1483 = vsel %vm171, %v1482, 0
    %1485 = vmatprep.subr.mxu0 0.0
    %1486 = vmatpush1.msra.mxu0 %v1375
    %1487 = vmatprep.subr.mxu0 0.0
    %1488 = vmatpush1.msra.mxu0 %v1376
    %1489 = vmatprep.subr.mxu0 0.0
    %1490 = vmatpush1.msra.mxu0 %v1377
    %1491 = vmatprep.subr.mxu0 0.0
    %1492 = vmatpush1.msra.mxu0 %v1378
    %1493 = vmatprep.subr.mxu0 0.0
    %1494 = vmatpush1.msra.mxu0 0.0
    %1495 = vmatprep.subr.mxu0 0.0
    %1496 = vmatpush1.msra.mxu0 0.0
    %1497 = vmatprep.subr.mxu0 0.0
    %1498 = vmatpush1.msra.mxu0 0.0
    %1499 = vmatprep.subr.mxu0 0.0
    %1500 = vmatpush1.msra.mxu0 0.0
    %1501 = vmatprep.subr.mxu0 0.0
    %1502 = vmatpush1.msra.mxu0 0.0
    %1503 = vmatprep.subr.mxu0 0.0
    %1504 = vmatpush1.msra.mxu0 0.0
    %1505 = vmatprep.subr.mxu0 0.0
    %1506 = vmatpush1.msra.mxu0 0.0
    %1507 = vmatprep.subr.mxu0 0.0
    %1508 = vmatpush1.msra.mxu0 0.0
    %1509 = vmatprep.subr.mxu0 0.0
    %1510 = vmatpush1.msra.mxu0 0.0
    %1511 = vmatprep.subr.mxu0 0.0
    %1512 = vmatpush1.msra.mxu0 0.0
    %1513 = vmatprep.subr.mxu0 0.0
    %1514 = vmatpush1.msra.mxu0 0.0
    %1515 = vmatprep.subr.mxu0 0.0
    %1516 = vmatpush1.msra.mxu0 0.0
    %1517 = vmatprep.subr.mxu0 0.0
    %1518 = vmatpush1.msra.mxu0 0.0
    %1519 = vmatprep.subr.mxu0 0.0
    %1520 = vmatpush1.msra.mxu0 0.0
    %1521 = vmatprep.subr.mxu0 0.0
    %1522 = vmatpush1.msra.mxu0 0.0
    %1523 = vmatprep.subr.mxu0 0.0
    %1524 = vmatpush1.msra.mxu0 0.0
    %1525 = vmatprep.subr.mxu0 0.0
    %1526 = vmatpush1.msra.mxu0 0.0
    %1527 = vmatprep.subr.mxu0 0.0
    %1528 = vmatpush1.msra.mxu0 0.0
    %1529 = vmatprep.subr.mxu0 0.0
    %1530 = vmatpush1.msra.mxu0 0.0
    %1531 = vmatprep.subr.mxu0 0.0
    %1532 = vmatpush1.msra.mxu0 0.0
    %1533 = vmatprep.subr.mxu0 0.0
    %1534 = vmatpush1.msra.mxu0 0.0
    %1535 = vmatprep.subr.mxu0 0.0
    %1536 = vmatpush1.msra.mxu0 0.0
    %1537 = vmatprep.subr.mxu0 0.0
    %1538 = vmatpush1.msra.mxu0 0.0
    %1539 = vmatprep.subr.mxu0 0.0
    %1540 = vmatpush1.msra.mxu0 0.0
    %1541 = vmatprep.subr.mxu0 0.0
    %1542 = vmatpush1.msra.mxu0 0.0
    %1543 = vmatprep.subr.mxu0 0.0
    %1544 = vmatpush1.msra.mxu0 0.0
    %1545 = vmatprep.subr.mxu0 0.0
    %1546 = vmatpush1.msra.mxu0 0.0
    %1547 = vmatprep.subr.mxu0 0.0
    %1548 = vmatpush1.msra.mxu0 0.0
    %1549 = vmatprep.mubr.f32.mxu0 0.0
    %1550 = vmatmul.mubr.f32.gmra.mrb[0].mxu0 %v1483
    %v1551 = vpop.f32.mrb[0].mxu0
    %v1552 = vadd.f32 0.0, %v1551
    %v1553 = vpop.f32.mrb[0].mxu0
    %1554 = vdwg.mxu0
    %v1555 = vadd.f32 %v1479, %v1552
    %v1556 = vxor.u32 %v1555, 2147483648
    %v1557 = vmul.f32 %v1556, 1.442695
    %v1558 = vpow.pop %v1557
    %v1559 = vadd.f32 %v1558, 1.0
    %v1560 = vrcp.pop %v1559
    %v1561 = vmul.f32 1.0, %v1560
    %v1562 = vtanh.pop %v1555
    %1564 = vrot.lane.b32.xlu0 %v1562, 64
    %v1565 = vpop.permute.xlu0 %1564
    %v1567 = vmul.f32 %v1561, %v1565
    %1569 = vrot.lane.b32.xlu0 %v1471, 96
    %v1570 = vpop.permute.xlu0 %1569
    %v1572 = vmul.f32 %v1561, %v1570
    %1574 = vrot.lane.b32.xlu0 %v1572, 32
    %v1575 = vpop.permute.xlu0 %1574
    %v1577 = vadd.f32 %v1567, %v1575
    %v1578 = vtanh.pop %v1577
    %1580 = vrot.lane.b32.xlu0 %v1578, 32
    %v1581 = vpop.permute.xlu0 %1580
    %v1583 = vmul.f32 %v1561, %v1581
    %s1584 = scalar_lea.vmem [#allocation2], 4
    %v1585 = vld [vmem:[%s1584] sm:$0x3]
    %1587 = vrot.lane.b32.xlu0 %v1583, 96
    %v1588 = vpop.permute.xlu0 %1587
    %v1589 = vsel %vm171, %v1588, 0
    %1591 = vmatprep.subr.mxu0 0.0
    %1592 = vmatpush1.msra.mxu0 %v1375
    %1593 = vmatprep.subr.mxu0 0.0
    %1594 = vmatpush1.msra.mxu0 %v1376
    %1595 = vmatprep.subr.mxu0 0.0
    %1596 = vmatpush1.msra.mxu0 %v1377
    %1597 = vmatprep.subr.mxu0 0.0
    %1598 = vmatpush1.msra.mxu0 %v1378
    %1599 = vmatprep.subr.mxu0 0.0
    %1600 = vmatpush1.msra.mxu0 0.0
    %1601 = vmatprep.subr.mxu0 0.0
    %1602 = vmatpush1.msra.mxu0 0.0
    %1603 = vmatprep.subr.mxu0 0.0
    %1604 = vmatpush1.msra.mxu0 0.0
    %1605 = vmatprep.subr.mxu0 0.0
    %1606 = vmatpush1.msra.mxu0 0.0
    %1607 = vmatprep.subr.mxu0 0.0
    %1608 = vmatpush1.msra.mxu0 0.0
    %1609 = vmatprep.subr.mxu0 0.0
    %1610 = vmatpush1.msra.mxu0 0.0
    %1611 = vmatprep.subr.mxu0 0.0
    %1612 = vmatpush1.msra.mxu0 0.0
    %1613 = vmatprep.subr.mxu0 0.0
    %1614 = vmatpush1.msra.mxu0 0.0
    %1615 = vmatprep.subr.mxu0 0.0
    %1616 = vmatpush1.msra.mxu0 0.0
    %1617 = vmatprep.subr.mxu0 0.0
    %1618 = vmatpush1.msra.mxu0 0.0
    %1619 = vmatprep.subr.mxu0 0.0
    %1620 = vmatpush1.msra.mxu0 0.0
    %1621 = vmatprep.subr.mxu0 0.0
    %1622 = vmatpush1.msra.mxu0 0.0
    %1623 = vmatprep.subr.mxu0 0.0
    %1624 = vmatpush1.msra.mxu0 0.0
    %1625 = vmatprep.subr.mxu0 0.0
    %1626 = vmatpush1.msra.mxu0 0.0
    %1627 = vmatprep.subr.mxu0 0.0
    %1628 = vmatpush1.msra.mxu0 0.0
    %1629 = vmatprep.subr.mxu0 0.0
    %1630 = vmatpush1.msra.mxu0 0.0
    %1631 = vmatprep.subr.mxu0 0.0
    %1632 = vmatpush1.msra.mxu0 0.0
    %1633 = vmatprep.subr.mxu0 0.0
    %1634 = vmatpush1.msra.mxu0 0.0
    %1635 = vmatprep.subr.mxu0 0.0
    %1636 = vmatpush1.msra.mxu0 0.0
    %1637 = vmatprep.subr.mxu0 0.0
    %1638 = vmatpush1.msra.mxu0 0.0
    %1639 = vmatprep.subr.mxu0 0.0
    %1640 = vmatpush1.msra.mxu0 0.0
    %1641 = vmatprep.subr.mxu0 0.0
    %1642 = vmatpush1.msra.mxu0 0.0
    %1643 = vmatprep.subr.mxu0 0.0
    %1644 = vmatpush1.msra.mxu0 0.0
    %1645 = vmatprep.subr.mxu0 0.0
    %1646 = vmatpush1.msra.mxu0 0.0
    %1647 = vmatprep.subr.mxu0 0.0
    %1648 = vmatpush1.msra.mxu0 0.0
    %1649 = vmatprep.subr.mxu0 0.0
    %1650 = vmatpush1.msra.mxu0 0.0
    %1651 = vmatprep.subr.mxu0 0.0
    %1652 = vmatpush1.msra.mxu0 0.0
    %1653 = vmatprep.subr.mxu0 0.0
    %1654 = vmatpush1.msra.mxu0 0.0
    %1655 = vmatprep.mubr.f32.mxu0 0.0
    %1656 = vmatmul.mubr.f32.gmra.mrb[0].mxu0 %v1589
    %v1657 = vpop.f32.mrb[0].mxu0
    %v1658 = vadd.f32 0.0, %v1657
    %v1659 = vpop.f32.mrb[0].mxu0
    %1660 = vdwg.mxu0
    %v1661 = vadd.f32 %v1585, %v1658
    %v1662 = vxor.u32 %v1661, 2147483648
    %v1663 = vmul.f32 %v1662, 1.442695
    %v1664 = vpow.pop %v1663
    %v1665 = vadd.f32 %v1664, 1.0
    %v1666 = vrcp.pop %v1665
    %v1667 = vmul.f32 1.0, %v1666
    %v1668 = vtanh.pop %v1661
    %1670 = vrot.lane.b32.xlu0 %v1668, 64
    %v1671 = vpop.permute.xlu0 %1670
    %v1673 = vmul.f32 %v1667, %v1671
    %1675 = vrot.lane.b32.xlu0 %v1577, 96
    %v1676 = vpop.permute.xlu0 %1675
    %v1678 = vmul.f32 %v1667, %v1676
    %1680 = vrot.lane.b32.xlu0 %v1678, 32
    %v1681 = vpop.permute.xlu0 %1680
    %v1683 = vadd.f32 %v1673, %v1681
    %v1684 = vtanh.pop %v1683
    %1686 = vrot.lane.b32.xlu0 %v1684, 32
    %v1687 = vpop.permute.xlu0 %1686
    %v1689 = vmul.f32 %v1667, %v1687
    %s1690 = scalar_lea.vmem [#allocation2], 6
    %v1691 = vld [vmem:[%s1690] sm:$0x3]
    %1693 = vrot.lane.b32.xlu0 %v1689, 96
    %v1694 = vpop.permute.xlu0 %1693
    %v1695 = vsel %vm171, %v1694, 0
    %1697 = vmatprep.subr.mxu0 0.0
    %1698 = vmatpush1.msra.mxu0 %v1375
    %1699 = vmatprep.subr.mxu0 0.0
    %1700 = vmatpush1.msra.mxu0 %v1376
    %1701 = vmatprep.subr.mxu0 0.0
    %1702 = vmatpush1.msra.mxu0 %v1377
    %1703 = vmatprep.subr.mxu0 0.0
    %1704 = vmatpush1.msra.mxu0 %v1378
    %1705 = vmatprep.subr.mxu0 0.0
    %1706 = vmatpush1.msra.mxu0 0.0
    %1707 = vmatprep.subr.mxu0 0.0
    %1708 = vmatpush1.msra.mxu0 0.0
    %1709 = vmatprep.subr.mxu0 0.0
    %1710 = vmatpush1.msra.mxu0 0.0
    %1711 = vmatprep.subr.mxu0 0.0
    %1712 = vmatpush1.msra.mxu0 0.0
    %1713 = vmatprep.subr.mxu0 0.0
    %1714 = vmatpush1.msra.mxu0 0.0
    %1715 = vmatprep.subr.mxu0 0.0
    %1716 = vmatpush1.msra.mxu0 0.0
    %1717 = vmatprep.subr.mxu0 0.0
    %1718 = vmatpush1.msra.mxu0 0.0
    %1719 = vmatprep.subr.mxu0 0.0
    %1720 = vmatpush1.msra.mxu0 0.0
    %1721 = vmatprep.subr.mxu0 0.0
    %1722 = vmatpush1.msra.mxu0 0.0
    %1723 = vmatprep.subr.mxu0 0.0
    %1724 = vmatpush1.msra.mxu0 0.0
    %1725 = vmatprep.subr.mxu0 0.0
    %1726 = vmatpush1.msra.mxu0 0.0
    %1727 = vmatprep.subr.mxu0 0.0
    %1728 = vmatpush1.msra.mxu0 0.0
    %1729 = vmatprep.subr.mxu0 0.0
    %1730 = vmatpush1.msra.mxu0 0.0
    %1731 = vmatprep.subr.mxu0 0.0
    %1732 = vmatpush1.msra.mxu0 0.0
    %1733 = vmatprep.subr.mxu0 0.0
    %1734 = vmatpush1.msra.mxu0 0.0
    %1735 = vmatprep.subr.mxu0 0.0
    %1736 = vmatpush1.msra.mxu0 0.0
    %1737 = vmatprep.subr.mxu0 0.0
    %1738 = vmatpush1.msra.mxu0 0.0
    %1739 = vmatprep.subr.mxu0 0.0
    %1740 = vmatpush1.msra.mxu0 0.0
    %1741 = vmatprep.subr.mxu0 0.0
    %1742 = vmatpush1.msra.mxu0 0.0
    %1743 = vmatprep.subr.mxu0 0.0
    %1744 = vmatpush1.msra.mxu0 0.0
    %1745 = vmatprep.subr.mxu0 0.0
    %1746 = vmatpush1.msra.mxu0 0.0
    %1747 = vmatprep.subr.mxu0 0.0
    %1748 = vmatpush1.msra.mxu0 0.0
    %1749 = vmatprep.subr.mxu0 0.0
    %1750 = vmatpush1.msra.mxu0 0.0
    %1751 = vmatprep.subr.mxu0 0.0
    %1752 = vmatpush1.msra.mxu0 0.0
    %1753 = vmatprep.subr.mxu0 0.0
    %1754 = vmatpush1.msra.mxu0 0.0
    %1755 = vmatprep.subr.mxu0 0.0
    %1756 = vmatpush1.msra.mxu0 0.0
    %1757 = vmatprep.subr.mxu0 0.0
    %1758 = vmatpush1.msra.mxu0 0.0
    %1759 = vmatprep.subr.mxu0 0.0
    %1760 = vmatpush1.msra.mxu0 0.0
    %1761 = vmatprep.mubr.f32.mxu0 0.0
    %1762 = vmatmul.mubr.f32.gmra.mrb[0].mxu0 %v1695
    %v1763 = vpop.f32.mrb[0].mxu0
    %v1764 = vadd.f32 0.0, %v1763
    %v1765 = vpop.f32.mrb[0].mxu0
    %1766 = vdwg.mxu0
    %v1767 = vadd.f32 %v1691, %v1764
    %v1768 = vxor.u32 %v1767, 2147483648
    %v1769 = vmul.f32 %v1768, 1.442695
    %v1770 = vpow.pop %v1769
    %v1771 = vadd.f32 %v1770, 1.0
    %v1772 = vrcp.pop %v1771
    %v1773 = vmul.f32 1.0, %v1772
    %v1774 = vtanh.pop %v1767
    %1776 = vrot.lane.b32.xlu0 %v1774, 64
    %v1777 = vpop.permute.xlu0 %1776
    %v1779 = vmul.f32 %v1773, %v1777
    %1781 = vrot.lane.b32.xlu0 %v1683, 96
    %v1782 = vpop.permute.xlu0 %1781
    %v1784 = vmul.f32 %v1773, %v1782
    %1786 = vrot.lane.b32.xlu0 %v1784, 32
    %v1787 = vpop.permute.xlu0 %1786
    %v1789 = vadd.f32 %v1779, %v1787
    %v1790 = vtanh.pop %v1789
    %1792 = vrot.lane.b32.xlu0 %v1790, 32
    %v1793 = vpop.permute.xlu0 %1792
    %v1795 = vmul.f32 %v1773, %v1793
    %s1796 = scalar_lea.vmem [#allocation2], 8
    %v1797 = vld [vmem:[%s1796] sm:$0x3]
    %1799 = vrot.lane.b32.xlu0 %v1795, 96
    %v1800 = vpop.permute.xlu0 %1799
    %v1801 = vsel %vm171, %v1800, 0
    %1803 = vmatprep.subr.mxu0 0.0
    %1804 = vmatpush1.msra.mxu0 %v1375
    %1805 = vmatprep.subr.mxu0 0.0
    %1806 = vmatpush1.msra.mxu0 %v1376
    %1807 = vmatprep.subr.mxu0 0.0
    %1808 = vmatpush1.msra.mxu0 %v1377
    %1809 = vmatprep.subr.mxu0 0.0
    %1810 = vmatpush1.msra.mxu0 %v1378
    %1811 = vmatprep.subr.mxu0 0.0
    %1812 = vmatpush1.msra.mxu0 0.0
    %1813 = vmatprep.subr.mxu0 0.0
    %1814 = vmatpush1.msra.mxu0 0.0
    %1815 = vmatprep.subr.mxu0 0.0
    %1816 = vmatpush1.msra.mxu0 0.0
    %1817 = vmatprep.subr.mxu0 0.0
    %1818 = vmatpush1.msra.mxu0 0.0
    %1819 = vmatprep.subr.mxu0 0.0
    %1820 = vmatpush1.msra.mxu0 0.0
    %1821 = vmatprep.subr.mxu0 0.0
    %1822 = vmatpush1.msra.mxu0 0.0
    %1823 = vmatprep.subr.mxu0 0.0
    %1824 = vmatpush1.msra.mxu0 0.0
    %1825 = vmatprep.subr.mxu0 0.0
    %1826 = vmatpush1.msra.mxu0 0.0
    %1827 = vmatprep.subr.mxu0 0.0
    %1828 = vmatpush1.msra.mxu0 0.0
    %1829 = vmatprep.subr.mxu0 0.0
    %1830 = vmatpush1.msra.mxu0 0.0
    %1831 = vmatprep.subr.mxu0 0.0
    %1832 = vmatpush1.msra.mxu0 0.0
    %1833 = vmatprep.subr.mxu0 0.0
    %1834 = vmatpush1.msra.mxu0 0.0
    %1835 = vmatprep.subr.mxu0 0.0
    %1836 = vmatpush1.msra.mxu0 0.0
    %1837 = vmatprep.subr.mxu0 0.0
    %1838 = vmatpush1.msra.mxu0 0.0
    %1839 = vmatprep.subr.mxu0 0.0
    %1840 = vmatpush1.msra.mxu0 0.0
    %1841 = vmatprep.subr.mxu0 0.0
    %1842 = vmatpush1.msra.mxu0 0.0
    %1843 = vmatprep.subr.mxu0 0.0
    %1844 = vmatpush1.msra.mxu0 0.0
    %1845 = vmatprep.subr.mxu0 0.0
    %1846 = vmatpush1.msra.mxu0 0.0
    %1847 = vmatprep.subr.mxu0 0.0
    %1848 = vmatpush1.msra.mxu0 0.0
    %1849 = vmatprep.subr.mxu0 0.0
    %1850 = vmatpush1.msra.mxu0 0.0
    %1851 = vmatprep.subr.mxu0 0.0
    %1852 = vmatpush1.msra.mxu0 0.0
    %1853 = vmatprep.subr.mxu0 0.0
    %1854 = vmatpush1.msra.mxu0 0.0
    %1855 = vmatprep.subr.mxu0 0.0
    %1856 = vmatpush1.msra.mxu0 0.0
    %1857 = vmatprep.subr.mxu0 0.0
    %1858 = vmatpush1.msra.mxu0 0.0
    %1859 = vmatprep.subr.mxu0 0.0
    %1860 = vmatpush1.msra.mxu0 0.0
    %1861 = vmatprep.subr.mxu0 0.0
    %1862 = vmatpush1.msra.mxu0 0.0
    %1863 = vmatprep.subr.mxu0 0.0
    %1864 = vmatpush1.msra.mxu0 0.0
    %1865 = vmatprep.subr.mxu0 0.0
    %1866 = vmatpush1.msra.mxu0 0.0
    %1867 = vmatprep.mubr.f32.mxu0 0.0
    %1868 = vmatmul.mubr.f32.gmra.mrb[0].mxu0 %v1801
    %v1869 = vpop.f32.mrb[0].mxu0
    %v1870 = vadd.f32 0.0, %v1869
    %v1871 = vpop.f32.mrb[0].mxu0
    %1872 = vdwg.mxu0
    %v1873 = vadd.f32 %v1797, %v1870
    %v1874 = vxor.u32 %v1873, 2147483648
    %v1875 = vmul.f32 %v1874, 1.442695
    %v1876 = vpow.pop %v1875
    %v1877 = vadd.f32 %v1876, 1.0
    %v1878 = vrcp.pop %v1877
    %v1879 = vmul.f32 1.0, %v1878
    %v1880 = vtanh.pop %v1873
    %1882 = vrot.lane.b32.xlu0 %v1880, 64
    %v1883 = vpop.permute.xlu0 %1882
    %v1885 = vmul.f32 %v1879, %v1883
    %1887 = vrot.lane.b32.xlu0 %v1789, 96
    %v1888 = vpop.permute.xlu0 %1887
    %v1890 = vmul.f32 %v1879, %v1888
    %1892 = vrot.lane.b32.xlu0 %v1890, 32
    %v1893 = vpop.permute.xlu0 %1892
    %v1895 = vadd.f32 %v1885, %v1893
    %v1896 = vtanh.pop %v1895
    %1898 = vrot.lane.b32.xlu0 %v1896, 32
    %v1899 = vpop.permute.xlu0 %1898
    %v1901 = vmul.f32 %v1879, %v1899
    %s1902 = scalar_lea.vmem [#allocation2], 10
    %v1903 = vld [vmem:[%s1902] sm:$0x3]
    %1905 = vrot.lane.b32.xlu0 %v1901, 96
    %v1906 = vpop.permute.xlu0 %1905
    %v1907 = vsel %vm171, %v1906, 0
    %1909 = vmatprep.subr.mxu0 0.0
    %1910 = vmatpush1.msra.mxu0 %v1375
    %1911 = vmatprep.subr.mxu0 0.0
    %1912 = vmatpush1.msra.mxu0 %v1376
    %1913 = vmatprep.subr.mxu0 0.0
    %1914 = vmatpush1.msra.mxu0 %v1377
    %1915 = vmatprep.subr.mxu0 0.0
    %1916 = vmatpush1.msra.mxu0 %v1378
    %1917 = vmatprep.subr.mxu0 0.0
    %1918 = vmatpush1.msra.mxu0 0.0
    %1919 = vmatprep.subr.mxu0 0.0
    %1920 = vmatpush1.msra.mxu0 0.0
    %1921 = vmatprep.subr.mxu0 0.0
    %1922 = vmatpush1.msra.mxu0 0.0
    %1923 = vmatprep.subr.mxu0 0.0
    %1924 = vmatpush1.msra.mxu0 0.0
    %1925 = vmatprep.subr.mxu0 0.0
    %1926 = vmatpush1.msra.mxu0 0.0
    %1927 = vmatprep.subr.mxu0 0.0
    %1928 = vmatpush1.msra.mxu0 0.0
    %1929 = vmatprep.subr.mxu0 0.0
    %1930 = vmatpush1.msra.mxu0 0.0
    %1931 = vmatprep.subr.mxu0 0.0
    %1932 = vmatpush1.msra.mxu0 0.0
    %1933 = vmatprep.subr.mxu0 0.0
    %1934 = vmatpush1.msra.mxu0 0.0
    %1935 = vmatprep.subr.mxu0 0.0
    %1936 = vmatpush1.msra.mxu0 0.0
    %1937 = vmatprep.subr.mxu0 0.0
    %1938 = vmatpush1.msra.mxu0 0.0
    %1939 = vmatprep.subr.mxu0 0.0
    %1940 = vmatpush1.msra.mxu0 0.0
    %1941 = vmatprep.subr.mxu0 0.0
    %1942 = vmatpush1.msra.mxu0 0.0
    %1943 = vmatprep.subr.mxu0 0.0
    %1944 = vmatpush1.msra.mxu0 0.0
    %1945 = vmatprep.subr.mxu0 0.0
    %1946 = vmatpush1.msra.mxu0 0.0
    %1947 = vmatprep.subr.mxu0 0.0
    %1948 = vmatpush1.msra.mxu0 0.0
    %1949 = vmatprep.subr.mxu0 0.0
    %1950 = vmatpush1.msra.mxu0 0.0
    %1951 = vmatprep.subr.mxu0 0.0
    %1952 = vmatpush1.msra.mxu0 0.0
    %1953 = vmatprep.subr.mxu0 0.0
    %1954 = vmatpush1.msra.mxu0 0.0
    %1955 = vmatprep.subr.mxu0 0.0
    %1956 = vmatpush1.msra.mxu0 0.0
    %1957 = vmatprep.subr.mxu0 0.0
    %1958 = vmatpush1.msra.mxu0 0.0
    %1959 = vmatprep.subr.mxu0 0.0
    %1960 = vmatpush1.msra.mxu0 0.0
    %1961 = vmatprep.subr.mxu0 0.0
    %1962 = vmatpush1.msra.mxu0 0.0
    %1963 = vmatprep.subr.mxu0 0.0
    %1964 = vmatpush1.msra.mxu0 0.0
    %1965 = vmatprep.subr.mxu0 0.0
    %1966 = vmatpush1.msra.mxu0 0.0
    %1967 = vmatprep.subr.mxu0 0.0
    %1968 = vmatpush1.msra.mxu0 0.0
    %1969 = vmatprep.subr.mxu0 0.0
    %1970 = vmatpush1.msra.mxu0 0.0
    %1971 = vmatprep.subr.mxu0 0.0
    %1972 = vmatpush1.msra.mxu0 0.0
    %1973 = vmatprep.mubr.f32.mxu0 0.0
    %1974 = vmatmul.mubr.f32.gmra.mrb[0].mxu0 %v1907
    %v1975 = vpop.f32.mrb[0].mxu0
    %v1976 = vadd.f32 0.0, %v1975
    %v1977 = vpop.f32.mrb[0].mxu0
    %1978 = vdwg.mxu0
    %v1979 = vadd.f32 %v1903, %v1976
    %v1980 = vxor.u32 %v1979, 2147483648
    %v1981 = vmul.f32 %v1980, 1.442695
    %v1982 = vpow.pop %v1981
    %v1983 = vadd.f32 %v1982, 1.0
    %v1984 = vrcp.pop %v1983
    %v1985 = vmul.f32 1.0, %v1984
    %v1986 = vtanh.pop %v1979
    %1988 = vrot.lane.b32.xlu0 %v1986, 64
    %v1989 = vpop.permute.xlu0 %1988
    %v1991 = vmul.f32 %v1985, %v1989
    %1993 = vrot.lane.b32.xlu0 %v1895, 96
    %v1994 = vpop.permute.xlu0 %1993
    %v1996 = vmul.f32 %v1985, %v1994
    %1998 = vrot.lane.b32.xlu0 %v1996, 32
    %v1999 = vpop.permute.xlu0 %1998
    %v2001 = vadd.f32 %v1991, %v1999
    %v2002 = vtanh.pop %v2001
    %2004 = vrot.lane.b32.xlu0 %v2002, 32
    %v2005 = vpop.permute.xlu0 %2004
    %v2007 = vmul.f32 %v1985, %v2005
    %s2008 = scalar_lea.vmem [#allocation2], 12
    %v2009 = vld [vmem:[%s2008] sm:$0x3]
    %2011 = vrot.lane.b32.xlu0 %v2007, 96
    %v2012 = vpop.permute.xlu0 %2011
    %v2013 = vsel %vm171, %v2012, 0
    %2015 = vmatprep.subr.mxu0 0.0
    %2016 = vmatpush1.msra.mxu0 %v1375
    %2017 = vmatprep.subr.mxu0 0.0
    %2018 = vmatpush1.msra.mxu0 %v1376
    %2019 = vmatprep.subr.mxu0 0.0
    %2020 = vmatpush1.msra.mxu0 %v1377
    %2021 = vmatprep.subr.mxu0 0.0
    %2022 = vmatpush1.msra.mxu0 %v1378
    %2023 = vmatprep.subr.mxu0 0.0
    %2024 = vmatpush1.msra.mxu0 0.0
    %2025 = vmatprep.subr.mxu0 0.0
    %2026 = vmatpush1.msra.mxu0 0.0
    %2027 = vmatprep.subr.mxu0 0.0
    %2028 = vmatpush1.msra.mxu0 0.0
    %2029 = vmatprep.subr.mxu0 0.0
    %2030 = vmatpush1.msra.mxu0 0.0
    %2031 = vmatprep.subr.mxu0 0.0
    %2032 = vmatpush1.msra.mxu0 0.0
    %2033 = vmatprep.subr.mxu0 0.0
    %2034 = vmatpush1.msra.mxu0 0.0
    %2035 = vmatprep.subr.mxu0 0.0
    %2036 = vmatpush1.msra.mxu0 0.0
    %2037 = vmatprep.subr.mxu0 0.0
    %2038 = vmatpush1.msra.mxu0 0.0
    %2039 = vmatprep.subr.mxu0 0.0
    %2040 = vmatpush1.msra.mxu0 0.0
    %2041 = vmatprep.subr.mxu0 0.0
    %2042 = vmatpush1.msra.mxu0 0.0
    %2043 = vmatprep.subr.mxu0 0.0
    %2044 = vmatpush1.msra.mxu0 0.0
    %2045 = vmatprep.subr.mxu0 0.0
    %2046 = vmatpush1.msra.mxu0 0.0
    %2047 = vmatprep.subr.mxu0 0.0
    %2048 = vmatpush1.msra.mxu0 0.0
    %2049 = vmatprep.subr.mxu0 0.0
    %2050 = vmatpush1.msra.mxu0 0.0
    %2051 = vmatprep.subr.mxu0 0.0
    %2052 = vmatpush1.msra.mxu0 0.0
    %2053 = vmatprep.subr.mxu0 0.0
    %2054 = vmatpush1.msra.mxu0 0.0
    %2055 = vmatprep.subr.mxu0 0.0
    %2056 = vmatpush1.msra.mxu0 0.0
    %2057 = vmatprep.subr.mxu0 0.0
    %2058 = vmatpush1.msra.mxu0 0.0
    %2059 = vmatprep.subr.mxu0 0.0
    %2060 = vmatpush1.msra.mxu0 0.0
    %2061 = vmatprep.subr.mxu0 0.0
    %2062 = vmatpush1.msra.mxu0 0.0
    %2063 = vmatprep.subr.mxu0 0.0
    %2064 = vmatpush1.msra.mxu0 0.0
    %2065 = vmatprep.subr.mxu0 0.0
    %2066 = vmatpush1.msra.mxu0 0.0
    %2067 = vmatprep.subr.mxu0 0.0
    %2068 = vmatpush1.msra.mxu0 0.0
    %2069 = vmatprep.subr.mxu0 0.0
    %2070 = vmatpush1.msra.mxu0 0.0
    %2071 = vmatprep.subr.mxu0 0.0
    %2072 = vmatpush1.msra.mxu0 0.0
    %2073 = vmatprep.subr.mxu0 0.0
    %2074 = vmatpush1.msra.mxu0 0.0
    %2075 = vmatprep.subr.mxu0 0.0
    %2076 = vmatpush1.msra.mxu0 0.0
    %2077 = vmatprep.subr.mxu0 0.0
    %2078 = vmatpush1.msra.mxu0 0.0
    %2079 = vmatprep.mubr.f32.mxu0 0.0
    %2080 = vmatmul.mubr.f32.gmra.mrb[0].mxu0 %v2013
    %v2081 = vpop.f32.mrb[0].mxu0
    %v2082 = vadd.f32 0.0, %v2081
    %v2083 = vpop.f32.mrb[0].mxu0
    %2084 = vdwg.mxu0
    %v2085 = vadd.f32 %v2009, %v2082
    %v2086 = vxor.u32 %v2085, 2147483648
    %v2087 = vmul.f32 %v2086, 1.442695
    %v2088 = vpow.pop %v2087
    %v2089 = vadd.f32 %v2088, 1.0
    %v2090 = vrcp.pop %v2089
    %v2091 = vmul.f32 1.0, %v2090
    %v2092 = vtanh.pop %v2085
    %2094 = vrot.lane.b32.xlu0 %v2092, 64
    %v2095 = vpop.permute.xlu0 %2094
    %v2097 = vmul.f32 %v2091, %v2095
    %2099 = vrot.lane.b32.xlu0 %v2001, 96
    %v2100 = vpop.permute.xlu0 %2099
    %v2102 = vmul.f32 %v2091, %v2100
    %2104 = vrot.lane.b32.xlu0 %v2102, 32
    %v2105 = vpop.permute.xlu0 %2104
    %v2107 = vadd.f32 %v2097, %v2105
    %v2108 = vtanh.pop %v2107
    %2110 = vrot.lane.b32.xlu0 %v2108, 32
    %v2111 = vpop.permute.xlu0 %2110
    %v2113 = vmul.f32 %v2091, %v2111
    %s2114 = scalar_lea.vmem [#allocation2], 14
    %v2115 = vld [vmem:[%s2114] sm:$0x3]
    %2117 = vrot.lane.b32.xlu0 %v2113, 96
    %v2118 = vpop.permute.xlu0 %2117
    %v2119 = vsel %vm171, %v2118, 0
    %2121 = vmatprep.subr.mxu0 0.0
    %2122 = vmatpush1.msra.mxu0 %v1375
    %2123 = vmatprep.subr.mxu0 0.0
    %2124 = vmatpush1.msra.mxu0 %v1376
    %2125 = vmatprep.subr.mxu0 0.0
    %2126 = vmatpush1.msra.mxu0 %v1377
    %2127 = vmatprep.subr.mxu0 0.0
    %2128 = vmatpush1.msra.mxu0 %v1378
    %2129 = vmatprep.subr.mxu0 0.0
    %2130 = vmatpush1.msra.mxu0 0.0
    %2131 = vmatprep.subr.mxu0 0.0
    %2132 = vmatpush1.msra.mxu0 0.0
    %2133 = vmatprep.subr.mxu0 0.0
    %2134 = vmatpush1.msra.mxu0 0.0
    %2135 = vmatprep.subr.mxu0 0.0
    %2136 = vmatpush1.msra.mxu0 0.0
    %2137 = vmatprep.subr.mxu0 0.0
    %2138 = vmatpush1.msra.mxu0 0.0
    %2139 = vmatprep.subr.mxu0 0.0
    %2140 = vmatpush1.msra.mxu0 0.0
    %2141 = vmatprep.subr.mxu0 0.0
    %2142 = vmatpush1.msra.mxu0 0.0
    %2143 = vmatprep.subr.mxu0 0.0
    %2144 = vmatpush1.msra.mxu0 0.0
    %2145 = vmatprep.subr.mxu0 0.0
    %2146 = vmatpush1.msra.mxu0 0.0
    %2147 = vmatprep.subr.mxu0 0.0
    %2148 = vmatpush1.msra.mxu0 0.0
    %2149 = vmatprep.subr.mxu0 0.0
    %2150 = vmatpush1.msra.mxu0 0.0
    %2151 = vmatprep.subr.mxu0 0.0
    %2152 = vmatpush1.msra.mxu0 0.0
    %2153 = vmatprep.subr.mxu0 0.0
    %2154 = vmatpush1.msra.mxu0 0.0
    %2155 = vmatprep.subr.mxu0 0.0
    %2156 = vmatpush1.msra.mxu0 0.0
    %2157 = vmatprep.subr.mxu0 0.0
    %2158 = vmatpush1.msra.mxu0 0.0
    %2159 = vmatprep.subr.mxu0 0.0
    %2160 = vmatpush1.msra.mxu0 0.0
    %2161 = vmatprep.subr.mxu0 0.0
    %2162 = vmatpush1.msra.mxu0 0.0
    %2163 = vmatprep.subr.mxu0 0.0
    %2164 = vmatpush1.msra.mxu0 0.0
    %2165 = vmatprep.subr.mxu0 0.0
    %2166 = vmatpush1.msra.mxu0 0.0
    %2167 = vmatprep.subr.mxu0 0.0
    %2168 = vmatpush1.msra.mxu0 0.0
    %2169 = vmatprep.subr.mxu0 0.0
    %2170 = vmatpush1.msra.mxu0 0.0
    %2171 = vmatprep.subr.mxu0 0.0
    %2172 = vmatpush1.msra.mxu0 0.0
    %2173 = vmatprep.subr.mxu0 0.0
    %2174 = vmatpush1.msra.mxu0 0.0
    %2175 = vmatprep.subr.mxu0 0.0
    %2176 = vmatpush1.msra.mxu0 0.0
    %2177 = vmatprep.subr.mxu0 0.0
    %2178 = vmatpush1.msra.mxu0 0.0
    %2179 = vmatprep.subr.mxu0 0.0
    %2180 = vmatpush1.msra.mxu0 0.0
    %2181 = vmatprep.subr.mxu0 0.0
    %2182 = vmatpush1.msra.mxu0 0.0
    %2183 = vmatprep.subr.mxu0 0.0
    %2184 = vmatpush1.msra.mxu0 0.0
    %2185 = vmatprep.mubr.f32.mxu0 0.0
    %2186 = vmatmul.mubr.f32.gmra.mrb[0].mxu0 %v2119
    %v2187 = vpop.f32.mrb[0].mxu0
    %v2188 = vadd.f32 0.0, %v2187
    %v2189 = vpop.f32.mrb[0].mxu0
    %2190 = vdwg.mxu0
    %v2191 = vadd.f32 %v2115, %v2188
    %v2192 = vxor.u32 %v2191, 2147483648
    %v2193 = vmul.f32 %v2192, 1.442695
    %v2194 = vpow.pop %v2193
    %v2195 = vadd.f32 %v2194, 1.0
    %v2196 = vrcp.pop %v2195
    %v2197 = vmul.f32 1.0, %v2196
    %v2198 = vtanh.pop %v2191
    %2200 = vrot.lane.b32.xlu0 %v2198, 64
    %v2201 = vpop.permute.xlu0 %2200
    %v2203 = vmul.f32 %v2197, %v2201
    %2205 = vrot.lane.b32.xlu0 %v2107, 96
    %v2206 = vpop.permute.xlu0 %2205
    %v2208 = vmul.f32 %v2197, %v2206
    %2210 = vrot.lane.b32.xlu0 %v2208, 32
    %v2211 = vpop.permute.xlu0 %2210
    %v2213 = vadd.f32 %v2203, %v2211
    %v2214 = vtanh.pop %v2213
    %2216 = vrot.lane.b32.xlu0 %v2214, 32
    %v2217 = vpop.permute.xlu0 %2216
    %v2219 = vmul.f32 %v2197, %v2217
    %v2220 = vld [vmem:[#allocation7 + $0x48] sm:$0xff]
    %v2221 = vld [vmem:[#allocation7 + $0x50] sm:$0xff]
    %v2222 = vld [vmem:[#allocation7 + $0x58] sm:$0xff]
    %v2223 = vld [vmem:[#allocation7 + $0x60] sm:$0xff]
    %v2224 = vld [vmem:[#allocation7 + $0x68] sm:$0x1]
    %v2225 = vlaneseq
    %v2226 = vshrl.u32 %v2225, 7
    %v2227 = vsub.s32 0, %v2226
    %v2228 = vrot.slane %v2224, %v2227
    %2230 = vrot.lane.b32.xlu0 %v2219, 96
    %v2231 = vpop.permute.xlu0 %2230
    %v2232 = vsel %vm171, %v2231, 0
    %2234 = vmatprep.subr.mxu0 0.0
    %2235 = vmatpush1.msra.mxu0 %v2220
    %2236 = vmatprep.subr.mxu0 0.0
    %2237 = vmatpush1.msra.mxu0 %v2221
    %2238 = vmatprep.subr.mxu0 0.0
    %2239 = vmatpush1.msra.mxu0 %v2222
    %2240 = vmatprep.subr.mxu0 0.0
    %2241 = vmatpush1.msra.mxu0 %v2223
    %2242 = vmatprep.subr.mxu0 0.0
    %2243 = vmatpush1.msra.mxu0 0.0
    %2244 = vmatprep.subr.mxu0 0.0
    %2245 = vmatpush1.msra.mxu0 0.0
    %2246 = vmatprep.subr.mxu0 0.0
    %2247 = vmatpush1.msra.mxu0 0.0
    %2248 = vmatprep.subr.mxu0 0.0
    %2249 = vmatpush1.msra.mxu0 0.0
    %2250 = vmatprep.subr.mxu0 0.0
    %2251 = vmatpush1.msra.mxu0 0.0
    %2252 = vmatprep.subr.mxu0 0.0
    %2253 = vmatpush1.msra.mxu0 0.0
    %2254 = vmatprep.subr.mxu0 0.0
    %2255 = vmatpush1.msra.mxu0 0.0
    %2256 = vmatprep.subr.mxu0 0.0
    %2257 = vmatpush1.msra.mxu0 0.0
    %2258 = vmatprep.subr.mxu0 0.0
    %2259 = vmatpush1.msra.mxu0 0.0
    %2260 = vmatprep.subr.mxu0 0.0
    %2261 = vmatpush1.msra.mxu0 0.0
    %2262 = vmatprep.subr.mxu0 0.0
    %2263 = vmatpush1.msra.mxu0 0.0
    %2264 = vmatprep.subr.mxu0 0.0
    %2265 = vmatpush1.msra.mxu0 0.0
    %2266 = vmatprep.subr.mxu0 0.0
    %2267 = vmatpush1.msra.mxu0 0.0
    %2268 = vmatprep.subr.mxu0 0.0
    %2269 = vmatpush1.msra.mxu0 0.0
    %2270 = vmatprep.subr.mxu0 0.0
    %2271 = vmatpush1.msra.mxu0 0.0
    %2272 = vmatprep.subr.mxu0 0.0
    %2273 = vmatpush1.msra.mxu0 0.0
    %2274 = vmatprep.subr.mxu0 0.0
    %2275 = vmatpush1.msra.mxu0 0.0
    %2276 = vmatprep.subr.mxu0 0.0
    %2277 = vmatpush1.msra.mxu0 0.0
    %2278 = vmatprep.subr.mxu0 0.0
    %2279 = vmatpush1.msra.mxu0 0.0
    %2280 = vmatprep.subr.mxu0 0.0
    %2281 = vmatpush1.msra.mxu0 0.0
    %2282 = vmatprep.subr.mxu0 0.0
    %2283 = vmatpush1.msra.mxu0 0.0
    %2284 = vmatprep.subr.mxu0 0.0
    %2285 = vmatpush1.msra.mxu0 0.0
    %2286 = vmatprep.subr.mxu0 0.0
    %2287 = vmatpush1.msra.mxu0 0.0
    %2288 = vmatprep.subr.mxu0 0.0
    %2289 = vmatpush1.msra.mxu0 0.0
    %2290 = vmatprep.subr.mxu0 0.0
    %2291 = vmatpush1.msra.mxu0 0.0
    %2292 = vmatprep.subr.mxu0 0.0
    %2293 = vmatpush1.msra.mxu0 0.0
    %2294 = vmatprep.subr.mxu0 0.0
    %2295 = vmatpush1.msra.mxu0 0.0
    %2296 = vmatprep.subr.mxu0 0.0
    %2297 = vmatpush1.msra.mxu0 0.0
    %2298 = vmatprep.mubr.f32.mxu0 0.0
    %2299 = vmatmul.mubr.f32.gmra.mrb[0].mxu0 %v2232
    %v2300 = vpop.f32.mrb[0].mxu0
    %v2301 = vadd.f32 %v2228, %v2300
    %v2302 = vpop.f32.mrb[0].mxu0
    %2303 = vdwg.mxu0
    %s2304 = sld [smem:[#allocation3]]
    %v2305 = vstv %s2304
    %v2306 = vmul.f32 %v2301, %v2305
    %s2307 = ssub.f32 1.0, %s2304
    %v2308 = vstv %s2307
    %v2309 = vmul.f32 %v1171, %v2308
    %v2310 = vadd.f32 %v2306, %v2309
    %vm2311 = vcmask 9216
    %2312 = vst.msk [vmem:[#allocation9] sm:$0x3] %vm2311, %v2310
    // Predicated region
    $region34: #{joint_model_forward.1} parent=1 // pred_check
      _
    $region35: #{joint_model_forward.1} parent=1 // pred_check_branch
      %2314 = sbr.rel (0) target = $region37
    $region36: #{joint_model_forward.1} parent=1 // pred_region
      %s2316 = ssub.s32 32, 32
      %2317 = vsyncadd [#allocation6], %s2316
      %s2319 = sshll.u32 [#allocation9], 4
      %s2320 = int_to_ptr.vmem [resolvable:$true] %s2319
      %2322 = dma.vmem_to_hbm [thread:$0]  %s2320, 32, %s6, [#allocation6]
    $region37: #{joint_model_forward.1} parent=1 // pred_fallthru
      _
    // Predicated region
    $region38: #{joint_model_forward.1} parent=1 // pred_check
      _
    $region39: #{joint_model_forward.1} parent=1 // pred_check_branch
      %2324 = sbr.rel (0) target = $region41
    $region40: #{joint_model_forward.1} parent=1 // pred_region
      %2325 = dma.done [#allocation6], 32
    $region41: #{joint_model_forward.1} parent=1 // pred_fallthru
      _
    %2326 = vsyncpa [#allocation5], 1
    %2327 = vsyncpa [#allocation8], 1
    %2328 = vsyncpa [#allocation6], 1

</llo_original>
